<compile_context>
chip_gen: v7x
topology: tpu7x:2x2x1
jax: 0.10.0
libtpu: 0.0.40
codegen_flags: <defaults>
</compile_context>

<pallas_src>
import functools

import jax
import jax.numpy as jnp
from jax import lax
from jax.experimental import pallas as pl
from jax.experimental.pallas import tpu as pltpu


def _round_up(x, m):
    return (x + m - 1) // m * m


def lstm_kernel(x_ref, wih_ref, whh_ref, b_ref, wfc_ref, bfc_ref, out_ref,
                h_sc, c_sc, xproj_sc, *, seq_len, needs_mask):
    """One grid step == one (batch_tile, time_chunk).  The LSTM recurrence runs in-kernel; the
    whole chunk's input projection is a single MXU GEMM done before the serial loop."""
    s = pl.program_id(1)                        # time-chunk index ("arbitrary" sequential axis)
    t_chunk, b_tile, E = x_ref.shape
    Hp = whh_ref.shape[0]                       # lane-padded hidden size
    G = 4 * Hp

    @pl.when(s == 0)
    def _():
        h_sc[...] = jnp.zeros_like(h_sc)
        c_sc[...] = jnp.zeros_like(c_sc)

    # ---- Hoisted input projection: one big GEMM with M = t_chunk * b_tile (fills the MXU). ----
    x2d = x_ref[...].reshape(t_chunk * b_tile, E)
    xproj = jnp.dot(x2d.astype(wih_ref.dtype), wih_ref[...],
                    preferred_element_type=jnp.float32) + b_ref[...]      # bias folded in once
    xproj_sc[...] = xproj.reshape(t_chunk, b_tile, G)

    w_hh = whh_ref[...]                         # (Hp, 4Hp) resident recurrent weight

    def step(j, carry):
        h, c = carry                            # (b_tile, Hp) f32 each
        gates = xproj_sc[j] + jnp.dot(h.astype(w_hh.dtype), w_hh,
                                      preferred_element_type=jnp.float32)  # (b_tile, 4Hp)
        # Host-side reordered gate layout: (i, f, o, g).  sigmoid over the first 3Hp lanes only,
        # tanh over the last Hp lanes only -> half the transcendental work per step.
        sig = jax.nn.sigmoid(gates[:, :3 * Hp])
        g_g = jnp.tanh(gates[:, 3 * Hp:])
        i_g = sig[:, 0 * Hp:1 * Hp]
        f_g = sig[:, 1 * Hp:2 * Hp]
        o_g = sig[:, 2 * Hp:3 * Hp]
        c_new = f_g * c + i_g * g_g
        h_new = o_g * jnp.tanh(c_new)
        if needs_mask:                          # padded tail timesteps keep the previous state
            valid = (s * t_chunk + j) < seq_len
            h_new = jnp.where(valid, h_new, h)
            c_new = jnp.where(valid, c_new, c)
        return h_new, c_new

    h, c = lax.fori_loop(0, t_chunk, step, (h_sc[...], c_sc[...]),
                         unroll=min(t_chunk, 8))
    h_sc[...] = h
    c_sc[...] = c

    @pl.when(s == pl.num_programs(1) - 1)
    def _():
        # fc(H -> 1) + sigmoid as broadcast-multiply + lane reduction (avoids an N=1 MXU dot).
        logit = jnp.sum(h * wfc_ref[...], axis=-1, keepdims=True) + bfc_ref[...]
        out_ref[...] = jax.nn.sigmoid(logit).astype(out_ref.dtype)


def simple_rnn_forward(token_ids, params, *, t_chunk=None, b_tile=None,
                       compute_dtype=jnp.bfloat16, recurrent_dtype=jnp.float32,
                       weight_buffer_count=None, vmem_budget_bytes=24 * 2**20):
    """token_ids: (B, T) int32.  Returns (B, 1) float32, matching the PyTorch module."""
    emb = params["embedding"]                           # (V, E)
    w_ih, w_hh = params["w_ih"], params["w_hh"]         # (4H, E), (4H, H)
    b_ih, b_hh = params["b_ih"], params["b_hh"]         # (4H,), (4H,)
    w_fc, b_fc = params["w_fc"], params["b_fc"]         # (1, H), (1,)

    B, T = token_ids.shape
    E = emb.shape[1]
    H = w_hh.shape[1]                                   # hidden size (w_hh is (4H, H))
    Hp = _round_up(H, 128)                              # lane-aligned gate blocks

    # ---- batch tiling: pad B to a sublane multiple, pick an MXU-friendly default tile ----
    if b_tile is None:
        b_tile = min(_round_up(B, 8), 128)
    assert b_tile % 8 == 0, "batch tile must be a multiple of 8 (f32 sublane)"
    B_pad = _round_up(B, b_tile)
    nb = B_pad // b_tile

    ids = token_ids
    if B_pad != B:
        ids = jnp.pad(ids, ((0, B_pad - B), (0, 0)))    # pad rows gather token 0; sliced off below

    # ---- gate reorder (i,f,g,o) -> (i,f,o,g) and pad H -> Hp (zeros keep padded units inert) ----
    def reorder_pad_rows(w):                            # (4H, ...) -> (4Hp, ...)
        i, f, g, o = (w[k * H:(k + 1) * H] for k in range(4))
        pad = ((0, Hp - H),) + ((0, 0),) * (w.ndim - 1)
        return jnp.concatenate([jnp.pad(blk, pad) for blk in (i, f, o, g)], axis=0)

    wih_t = reorder_pad_rows(w_ih).T.astype(compute_dtype)                       # (E, 4Hp)
    whh_t = jnp.pad(reorder_pad_rows(w_hh),
                    ((0, 0), (0, Hp - H))).T.astype(recurrent_dtype)             # (Hp, 4Hp)
    bias = reorder_pad_rows((b_ih + b_hh)[:, None])[:, 0].reshape(1, 4 * Hp).astype(jnp.float32)
    w_fc_r = jnp.pad(w_fc.reshape(1, H), ((0, 0), (0, Hp - H))).astype(jnp.float32)
    b_fc_r = b_fc.reshape(1, 1).astype(jnp.float32)

    # ---- embedding gather, directly time-major, streamed in compute_dtype (halves HBM traffic) ----
    # TODO(synk): on v5e, fuse the gather into the kernel via scalar-prefetched token ids + manual
    # DMA to avoid the HBM round trip of the (T, B, E) activations.
    x_tme = jnp.take(emb, ids.T, axis=0).astype(compute_dtype)                    # (T, B_pad, E)

    # ---- time chunking sized to a VMEM budget; explicit vmem_limit computed from block sizes ----
    x_bytes = jnp.dtype(compute_dtype).itemsize
    w_bufs = 2 if weight_buffer_count is None else weight_buffer_count
    fixed = (w_bufs * ((E * 4 * Hp) * x_bytes
                       + (Hp * 4 * Hp) * jnp.dtype(recurrent_dtype).itemsize
                       + (4 * Hp + Hp + 1) * 4)
             + 2 * b_tile * Hp * 4)                                 # resident weights + h/c scratch
    per_t = 2 * b_tile * E * x_bytes + b_tile * 4 * Hp * 4          # dbl-buffered x + xproj scratch
    if t_chunk is None:
        t_chunk = int(max(1, min(T, (vmem_budget_bytes - fixed) // per_t)))
    n_chunks = pl.cdiv(T, t_chunk)
    T_pad = n_chunks * t_chunk
    if T_pad != T:
        x_tme = jnp.pad(x_tme, ((0, T_pad - T), (0, 0), (0, 0)))
    vmem_est = fixed + t_chunk * per_t + 2 * b_tile * 4
    vmem_limit = int(min(64 * 2**20, max(8 * 2**20, 2 * vmem_est)))

    def resident(shape):
        nd = len(shape)
        if weight_buffer_count is None:
            return pl.BlockSpec(shape, lambda bi, si: (0,) * nd)
        # On v7x (64 MiB VMEM) pass weight_buffer_count=1: the constant index_map means the block
        # is never refetched, so double buffering it is pure VMEM waste.
        return pl.BlockSpec(shape, lambda bi, si: (0,) * nd,
                            pipeline_mode=pl.Buffered(weight_buffer_count))

    kernel = functools.partial(lstm_kernel, seq_len=T, needs_mask=(T_pad != T))

    grid_spec = pltpu.PrefetchScalarGridSpec(
        num_scalar_prefetch=0,
        grid=(nb, n_chunks),
        in_specs=[
            pl.BlockSpec((t_chunk, b_tile, E), lambda bi, si: (si, bi, 0)),  # x time-chunk
            resident((E, 4 * Hp)),        # input-projection weight  (compute_dtype)
            resident((Hp, 4 * Hp)),       # recurrent weight         (recurrent_dtype, f32 default)
            resident((1, 4 * Hp)),        # fused gate bias          (f32)
            resident((1, Hp)),            # fc weight row            (f32)
            resident((1, 1)),             # fc bias                  (f32)
        ],
        out_specs=pl.BlockSpec((b_tile, 1), lambda bi, si: (bi, 0)),
        scratch_shapes=[
            pltpu.VMEM((b_tile, Hp), jnp.float32),                # h state (persists across chunks)
            pltpu.VMEM((b_tile, Hp), jnp.float32),                # c state
            pltpu.VMEM((t_chunk, b_tile, 4 * Hp), jnp.float32),   # hoisted input projection
        ],
    )

    out = pl.pallas_call(
        kernel,
        out_shape=jax.ShapeDtypeStruct((B_pad, 1), jnp.float32),
        grid_spec=grid_spec,
        compiler_params=pltpu.CompilerParams(
            # batch tiles are independent (sharded across TensorCores on v7x);
            # the time recurrence is sequential.
            dimension_semantics=("parallel", "arbitrary"),
            vmem_limit_bytes=vmem_limit),
    )(x_tme, wih_t, whh_t, bias, w_fc_r, b_fc_r)
    return out[:B]


def init_params(key, vocab_size, embedding_dim, hidden_dim):
    ks = jax.random.split(key, 7)
    s = 0.1
    return {
        "embedding": s * jax.random.normal(ks[0], (vocab_size, embedding_dim), jnp.float32),
        "w_ih": s * jax.random.normal(ks[1], (4 * hidden_dim, embedding_dim), jnp.float32),
        "w_hh": s * jax.random.normal(ks[2], (4 * hidden_dim, hidden_dim), jnp.float32),
        "b_ih": s * jax.random.normal(ks[3], (4 * hidden_dim,), jnp.float32),
        "b_hh": s * jax.random.normal(ks[4], (4 * hidden_dim,), jnp.float32),
        "w_fc": s * jax.random.normal(ks[5], (1, hidden_dim), jnp.float32),
        "b_fc": s * jax.random.normal(ks[6], (1,), jnp.float32),
    }


def reference_forward(token_ids, params):
    """Pure-JAX reference of the PyTorch forward for correctness checking."""
    emb = jnp.take(params["embedding"], token_ids, axis=0)      # (B, T, E)
    B, T, E = emb.shape
    H = params["w_hh"].shape[1]
    w_ih_t, w_hh_t = params["w_ih"].T, params["w_hh"].T
    b = params["b_ih"] + params["b_hh"]

    def step(carry, x_t):
        h, c = carry
        gates = x_t @ w_ih_t + h @ w_hh_t + b
        i = jax.nn.sigmoid(gates[:, 0 * H:1 * H])
        f = jax.nn.sigmoid(gates[:, 1 * H:2 * H])
        g = jnp.tanh(gates[:, 2 * H:3 * H])
        o = jax.nn.sigmoid(gates[:, 3 * H:4 * H])
        c = f * c + i * g
        h = o * jnp.tanh(c)
        return (h, c), None

    h0 = jnp.zeros((B, H), jnp.float32)
    (h_T, _), _ = lax.scan(step, (h0, h0), jnp.transpose(emb, (1, 0, 2)))
    logit = h_T @ params["w_fc"].T + params["b_fc"]
    return jax.nn.sigmoid(logit)


if __name__ == "__main__":
    vocab_size, embedding_dim, hidden_dim = 50, 16, 32
    B, T = 2, 8

    key = jax.random.PRNGKey(0)
    pkey, xkey, x2key, x3key = jax.random.split(key, 4)
    params = init_params(pkey, vocab_size, embedding_dim, hidden_dim)
    token_ids = jax.random.randint(xkey, (B, T), 0, vocab_size, dtype=jnp.int32)
    ref = reference_forward(token_ids, params)

    # 1) default path: bf16 input-projection operands / bf16 streamed activations, f32 recurrence.
    out = jax.block_until_ready(simple_rnn_forward(token_ids, params))
    assert out.shape == (B, 1)
    assert jnp.allclose(out, ref, atol=2e-2, rtol=2e-2)

    # 2) full f32 path (tight tolerance).
    out_f32 = jax.block_until_ready(
        simple_rnn_forward(token_ids, params, compute_dtype=jnp.float32))
    assert jnp.allclose(out_f32, ref, atol=1e-5, rtol=1e-5)

    # 3) time-chunked path (T not a multiple of t_chunk -> padded, masked tail timesteps).
    T2 = 10
    token_ids2 = jax.random.randint(x2key, (B, T2), 0, vocab_size, dtype=jnp.int32)
    out_chunked = jax.block_until_ready(
        simple_rnn_forward(token_ids2, params, t_chunk=4, compute_dtype=jnp.float32))
    ref2 = reference_forward(token_ids2, params)
    assert jnp.allclose(out_chunked, ref2, atol=1e-5, rtol=1e-5)

    # 4) batch-tiled path: B=16 with b_tile=8 -> two independent batch tiles on the parallel axis.
    B3 = 16
    token_ids3 = jax.random.randint(x3key, (B3, T), 0, vocab_size, dtype=jnp.int32)
    out_bt = jax.block_until_ready(
        simple_rnn_forward(token_ids3, params, b_tile=8, compute_dtype=jnp.float32))
    ref3 = reference_forward(token_ids3, params)
    assert jnp.allclose(out_bt, ref3, atol=1e-5, rtol=1e-5)

    print("KERNEL_OK")
</pallas_src>

<mosaic_0001>
module attributes {stable_mosaic.version = 11 : i64} {
  func.func @lstm_kernel(%arg0: i32, %arg1: i32, %arg2: memref<8x8x16xbf16, #tpu.memory_space<vmem>>, %arg3: memref<16x512xbf16, #tpu.memory_space<vmem>>, %arg4: memref<128x512xf32, #tpu.memory_space<vmem>>, %arg5: memref<1x512xf32, #tpu.memory_space<vmem>>, %arg6: memref<1x128xf32, #tpu.memory_space<vmem>>, %arg7: memref<1x1xf32, #tpu.memory_space<vmem>>, %arg8: memref<8x1xf32, #tpu.memory_space<vmem>>, %arg9: memref<8x128xf32, #tpu.memory_space<vmem>>, %arg10: memref<8x128xf32, #tpu.memory_space<vmem>>, %arg11: memref<8x8x512xf32, #tpu.memory_space<vmem>>) attributes {dimension_semantics = [#tpu.dimension_semantics<parallel>, #tpu.dimension_semantics<arbitrary>], iteration_bounds = array<i64: 1, 1>, scalar_prefetch = 0 : i64, scratch_operands = 3 : i64, tpu.core_type = #tpu.core_type<tc>, window_params = [{transform_indices = @transform_0, window_bounds = array<i64: 8, 8, 16>}, {pipeline_mode = #tpu.pipeline_mode<synchronous>, transform_indices = @transform_1, window_bounds = array<i64: 16, 512>}, {pipeline_mode = #tpu.pipeline_mode<synchronous>, transform_indices = @transform_2, window_bounds = array<i64: 128, 512>}, {pipeline_mode = #tpu.pipeline_mode<synchronous>, transform_indices = @transform_3, window_bounds = array<i64: 1, 512>}, {pipeline_mode = #tpu.pipeline_mode<synchronous>, transform_indices = @transform_4, window_bounds = array<i64: 1, 128>}, {pipeline_mode = #tpu.pipeline_mode<synchronous>, transform_indices = @transform_5, window_bounds = array<i64: 1, 1>}, {transform_indices = @transform_6, window_bounds = array<i64: 8, 1>}]} {
    %c0_i32 = arith.constant 0 : i32
    %0 = arith.cmpi eq, %arg1, %c0_i32 : i32
    %1 = arith.extui %0 : i1 to i32
    %c0_i32_0 = arith.constant 0 : i32
    %2 = arith.cmpi ne, %1, %c0_i32_0 : i32
    scf.if %2 {
      %cst_55 = arith.constant 0.000000e+00 : f32
      %188 = vector.broadcast %cst_55 : f32 to vector<8x128xf32>
      %c0_56 = arith.constant 0 : index
      %c0_57 = arith.constant 0 : index
      %189 = vector.load %arg9[%c0_56, %c0_57] : memref<8x128xf32, #tpu.memory_space<vmem>>, vector<8x128xf32>
      tpu.vector_store %arg9[%c0_56, %c0_57], %188 {strides = array<i32>} : memref<8x128xf32, #tpu.memory_space<vmem>>, vector<8x128xf32>,
      %cst_58 = arith.constant 0.000000e+00 : f32
      %190 = vector.broadcast %cst_58 : f32 to vector<8x128xf32>
      %c0_59 = arith.constant 0 : index
      %c0_60 = arith.constant 0 : index
      %191 = vector.load %arg10[%c0_59, %c0_60] : memref<8x128xf32, #tpu.memory_space<vmem>>, vector<8x128xf32>
      tpu.vector_store %arg10[%c0_59, %c0_60], %190 {strides = array<i32>} : memref<8x128xf32, #tpu.memory_space<vmem>>, vector<8x128xf32>,
    } else {
    }
    %c0 = arith.constant 0 : index
    %c0_1 = arith.constant 0 : index
    %c0_2 = arith.constant 0 : index
    %3 = vector.load %arg2[%c0, %c0_1, %c0_2] : memref<8x8x16xbf16, #tpu.memory_space<vmem>>, vector<8x8x16xbf16>
    %4 = vector.shape_cast %3 : vector<8x8x16xbf16> to vector<64x16xbf16>
    %c0_3 = arith.constant 0 : index
    %c0_4 = arith.constant 0 : index
    %5 = vector.load %arg3[%c0_3, %c0_4] : memref<16x512xbf16, #tpu.memory_space<vmem>>, vector<16x512xbf16>
    %cst = arith.constant dense<0.000000e+00> : vector<64x512xf32>
    %6 = tpu.matmul %4, %5, %cst {dimension_numbers = #tpu.dot_dimension_numbers<[1], [0], [0], [1], [0, 0, 1, 1], [], []>} : vector<64x16xbf16>, vector<16x512xbf16>, vector<64x512xf32> -> vector<64x512xf32>
    %c0_5 = arith.constant 0 : index
    %c0_6 = arith.constant 0 : index
    %7 = vector.load %arg5[%c0_5, %c0_6] : memref<1x512xf32, #tpu.memory_space<vmem>>, vector<1x512xf32>
    %8 = vector.broadcast %7 : vector<1x512xf32> to vector<64x512xf32>
    %9 = arith.addf %6, %8 : vector<64x512xf32>
    %10 = vector.shape_cast %9 : vector<64x512xf32> to vector<8x8x512xf32>
    %c0_7 = arith.constant 0 : index
    %c0_8 = arith.constant 0 : index
    %c0_9 = arith.constant 0 : index
    %11 = vector.load %arg11[%c0_7, %c0_8, %c0_9] : memref<8x8x512xf32, #tpu.memory_space<vmem>>, vector<8x8x512xf32>
    tpu.vector_store %arg11[%c0_7, %c0_8, %c0_9], %10 {strides = array<i32>} : memref<8x8x512xf32, #tpu.memory_space<vmem>>, vector<8x8x512xf32>,
    %c0_10 = arith.constant 0 : index
    %c0_11 = arith.constant 0 : index
    %12 = vector.load %arg4[%c0_10, %c0_11] : memref<128x512xf32, #tpu.memory_space<vmem>>, vector<128x512xf32>
    %c0_12 = arith.constant 0 : index
    %c0_13 = arith.constant 0 : index
    %13 = vector.load %arg9[%c0_12, %c0_13] : memref<8x128xf32, #tpu.memory_space<vmem>>, vector<8x128xf32>
    %c0_14 = arith.constant 0 : index
    %c0_15 = arith.constant 0 : index
    %14 = vector.load %arg10[%c0_14, %c0_15] : memref<8x128xf32, #tpu.memory_space<vmem>>, vector<8x128xf32>
    %c0_i32_16 = arith.constant 0 : i32
    %15 = arith.index_cast %c0_i32_16 : i32 to index
    %c0_17 = arith.constant 0 : index
    %c0_18 = arith.constant 0 : index
    %16 = vector.load %arg11[%15, %c0_17, %c0_18] : memref<8x8x512xf32, #tpu.memory_space<vmem>>, vector<1x8x512xf32>
    %17 = vector.shape_cast %16 : vector<1x8x512xf32> to vector<8x512xf32>
    %cst_19 = arith.constant dense<0.000000e+00> : vector<8x512xf32>
    %18 = tpu.matmul %13, %12, %cst_19 {dimension_numbers = #tpu.dot_dimension_numbers<[1], [0], [0], [1], [0, 0, 1, 1], [], []>} : vector<8x128xf32>, vector<128x512xf32>, vector<8x512xf32> -> vector<8x512xf32>
    %19 = arith.addf %17, %18 : vector<8x512xf32>
    %20 = vector.extract_strided_slice %19 {offsets = [0, 0], sizes = [8, 384], strides = [1, 1]} : vector<8x512xf32> to vector<8x384xf32>
    %21 = arith.negf %20 : vector<8x384xf32>
    %22 = math.exp %21 : vector<8x384xf32>
    %cst_20 = arith.constant 1.000000e+00 : f32
    %23 = vector.broadcast %cst_20 : f32 to vector<8x384xf32>
    %24 = arith.addf %23, %22 : vector<8x384xf32>
    %25 = arith.divf %23, %24 : vector<8x384xf32>
    %26 = vector.extract_strided_slice %19 {offsets = [0, 384], sizes = [8, 128], strides = [1, 1]} : vector<8x512xf32> to vector<8x128xf32>
    %27 = math.tanh %26 : vector<8x128xf32>
    %28 = vector.extract_strided_slice %25 {offsets = [0, 0], sizes = [8, 128], strides = [1, 1]} : vector<8x384xf32> to vector<8x128xf32>
    %29 = vector.extract_strided_slice %25 {offsets = [0, 128], sizes = [8, 128], strides = [1, 1]} : vector<8x384xf32> to vector<8x128xf32>
    %30 = vector.extract_strided_slice %25 {offsets = [0, 256], sizes = [8, 128], strides = [1, 1]} : vector<8x384xf32> to vector<8x128xf32>
    %31 = arith.mulf %29, %14 : vector<8x128xf32>
    %32 = arith.mulf %28, %27 : vector<8x128xf32>
    %33 = arith.addf %31, %32 : vector<8x128xf32>
    %34 = math.tanh %33 : vector<8x128xf32>
    %35 = arith.mulf %30, %34 : vector<8x128xf32>
    %c1_i32 = arith.constant 1 : i32
    %36 = arith.index_cast %c1_i32 : i32 to index
    %c0_21 = arith.constant 0 : index
    %c0_22 = arith.constant 0 : index
    %37 = vector.load %arg11[%36, %c0_21, %c0_22] : memref<8x8x512xf32, #tpu.memory_space<vmem>>, vector<1x8x512xf32>
    %38 = vector.shape_cast %37 : vector<1x8x512xf32> to vector<8x512xf32>
    %cst_23 = arith.constant dense<0.000000e+00> : vector<8x512xf32>
    %39 = tpu.matmul %35, %12, %cst_23 {dimension_numbers = #tpu.dot_dimension_numbers<[1], [0], [0], [1], [0, 0, 1, 1], [], []>} : vector<8x128xf32>, vector<128x512xf32>, vector<8x512xf32> -> vector<8x512xf32>
    %40 = arith.addf %38, %39 : vector<8x512xf32>
    %41 = vector.extract_strided_slice %40 {offsets = [0, 0], sizes = [8, 384], strides = [1, 1]} : vector<8x512xf32> to vector<8x384xf32>
    %42 = arith.negf %41 : vector<8x384xf32>
    %43 = math.exp %42 : vector<8x384xf32>
    %cst_24 = arith.constant 1.000000e+00 : f32
    %44 = vector.broadcast %cst_24 : f32 to vector<8x384xf32>
    %45 = arith.addf %44, %43 : vector<8x384xf32>
    %46 = arith.divf %44, %45 : vector<8x384xf32>
    %47 = vector.extract_strided_slice %40 {offsets = [0, 384], sizes = [8, 128], strides = [1, 1]} : vector<8x512xf32> to vector<8x128xf32>
    %48 = math.tanh %47 : vector<8x128xf32>
    %49 = vector.extract_strided_slice %46 {offsets = [0, 0], sizes = [8, 128], strides = [1, 1]} : vector<8x384xf32> to vector<8x128xf32>
    %50 = vector.extract_strided_slice %46 {offsets = [0, 128], sizes = [8, 128], strides = [1, 1]} : vector<8x384xf32> to vector<8x128xf32>
    %51 = vector.extract_strided_slice %46 {offsets = [0, 256], sizes = [8, 128], strides = [1, 1]} : vector<8x384xf32> to vector<8x128xf32>
    %52 = arith.mulf %50, %33 : vector<8x128xf32>
    %53 = arith.mulf %49, %48 : vector<8x128xf32>
    %54 = arith.addf %52, %53 : vector<8x128xf32>
    %55 = math.tanh %54 : vector<8x128xf32>
    %56 = arith.mulf %51, %55 : vector<8x128xf32>
    %c2_i32 = arith.constant 2 : i32
    %57 = arith.index_cast %c2_i32 : i32 to index
    %c0_25 = arith.constant 0 : index
    %c0_26 = arith.constant 0 : index
    %58 = vector.load %arg11[%57, %c0_25, %c0_26] : memref<8x8x512xf32, #tpu.memory_space<vmem>>, vector<1x8x512xf32>
    %59 = vector.shape_cast %58 : vector<1x8x512xf32> to vector<8x512xf32>
    %cst_27 = arith.constant dense<0.000000e+00> : vector<8x512xf32>
    %60 = tpu.matmul %56, %12, %cst_27 {dimension_numbers = #tpu.dot_dimension_numbers<[1], [0], [0], [1], [0, 0, 1, 1], [], []>} : vector<8x128xf32>, vector<128x512xf32>, vector<8x512xf32> -> vector<8x512xf32>
    %61 = arith.addf %59, %60 : vector<8x512xf32>
    %62 = vector.extract_strided_slice %61 {offsets = [0, 0], sizes = [8, 384], strides = [1, 1]} : vector<8x512xf32> to vector<8x384xf32>
    %63 = arith.negf %62 : vector<8x384xf32>
    %64 = math.exp %63 : vector<8x384xf32>
    %cst_28 = arith.constant 1.000000e+00 : f32
    %65 = vector.broadcast %cst_28 : f32 to vector<8x384xf32>
    %66 = arith.addf %65, %64 : vector<8x384xf32>
    %67 = arith.divf %65, %66 : vector<8x384xf32>
    %68 = vector.extract_strided_slice %61 {offsets = [0, 384], sizes = [8, 128], strides = [1, 1]} : vector<8x512xf32> to vector<8x128xf32>
    %69 = math.tanh %68 : vector<8x128xf32>
    %70 = vector.extract_strided_slice %67 {offsets = [0, 0], sizes = [8, 128], strides = [1, 1]} : vector<8x384xf32> to vector<8x128xf32>
    %71 = vector.extract_strided_slice %67 {offsets = [0, 128], sizes = [8, 128], strides = [1, 1]} : vector<8x384xf32> to vector<8x128xf32>
    %72 = vector.extract_strided_slice %67 {offsets = [0, 256], sizes = [8, 128], strides = [1, 1]} : vector<8x384xf32> to vector<8x128xf32>
    %73 = arith.mulf %71, %54 : vector<8x128xf32>
    %74 = arith.mulf %70, %69 : vector<8x128xf32>
    %75 = arith.addf %73, %74 : vector<8x128xf32>
    %76 = math.tanh %75 : vector<8x128xf32>
    %77 = arith.mulf %72, %76 : vector<8x128xf32>
    %c3_i32 = arith.constant 3 : i32
    %78 = arith.index_cast %c3_i32 : i32 to index
    %c0_29 = arith.constant 0 : index
    %c0_30 = arith.constant 0 : index
    %79 = vector.load %arg11[%78, %c0_29, %c0_30] : memref<8x8x512xf32, #tpu.memory_space<vmem>>, vector<1x8x512xf32>
    %80 = vector.shape_cast %79 : vector<1x8x512xf32> to vector<8x512xf32>
    %cst_31 = arith.constant dense<0.000000e+00> : vector<8x512xf32>
    %81 = tpu.matmul %77, %12, %cst_31 {dimension_numbers = #tpu.dot_dimension_numbers<[1], [0], [0], [1], [0, 0, 1, 1], [], []>} : vector<8x128xf32>, vector<128x512xf32>, vector<8x512xf32> -> vector<8x512xf32>
    %82 = arith.addf %80, %81 : vector<8x512xf32>
    %83 = vector.extract_strided_slice %82 {offsets = [0, 0], sizes = [8, 384], strides = [1, 1]} : vector<8x512xf32> to vector<8x384xf32>
    %84 = arith.negf %83 : vector<8x384xf32>
    %85 = math.exp %84 : vector<8x384xf32>
    %cst_32 = arith.constant 1.000000e+00 : f32
    %86 = vector.broadcast %cst_32 : f32 to vector<8x384xf32>
    %87 = arith.addf %86, %85 : vector<8x384xf32>
    %88 = arith.divf %86, %87 : vector<8x384xf32>
    %89 = vector.extract_strided_slice %82 {offsets = [0, 384], sizes = [8, 128], strides = [1, 1]} : vector<8x512xf32> to vector<8x128xf32>
    %90 = math.tanh %89 : vector<8x128xf32>
    %91 = vector.extract_strided_slice %88 {offsets = [0, 0], sizes = [8, 128], strides = [1, 1]} : vector<8x384xf32> to vector<8x128xf32>
    %92 = vector.extract_strided_slice %88 {offsets = [0, 128], sizes = [8, 128], strides = [1, 1]} : vector<8x384xf32> to vector<8x128xf32>
    %93 = vector.extract_strided_slice %88 {offsets = [0, 256], sizes = [8, 128], strides = [1, 1]} : vector<8x384xf32> to vector<8x128xf32>
    %94 = arith.mulf %92, %75 : vector<8x128xf32>
    %95 = arith.mulf %91, %90 : vector<8x128xf32>
    %96 = arith.addf %94, %95 : vector<8x128xf32>
    %97 = math.tanh %96 : vector<8x128xf32>
    %98 = arith.mulf %93, %97 : vector<8x128xf32>
    %c4_i32 = arith.constant 4 : i32
    %99 = arith.index_cast %c4_i32 : i32 to index
    %c0_33 = arith.constant 0 : index
    %c0_34 = arith.constant 0 : index
    %100 = vector.load %arg11[%99, %c0_33, %c0_34] : memref<8x8x512xf32, #tpu.memory_space<vmem>>, vector<1x8x512xf32>
    %101 = vector.shape_cast %100 : vector<1x8x512xf32> to vector<8x512xf32>
    %cst_35 = arith.constant dense<0.000000e+00> : vector<8x512xf32>
    %102 = tpu.matmul %98, %12, %cst_35 {dimension_numbers = #tpu.dot_dimension_numbers<[1], [0], [0], [1], [0, 0, 1, 1], [], []>} : vector<8x128xf32>, vector<128x512xf32>, vector<8x512xf32> -> vector<8x512xf32>
    %103 = arith.addf %101, %102 : vector<8x512xf32>
    %104 = vector.extract_strided_slice %103 {offsets = [0, 0], sizes = [8, 384], strides = [1, 1]} : vector<8x512xf32> to vector<8x384xf32>
    %105 = arith.negf %104 : vector<8x384xf32>
    %106 = math.exp %105 : vector<8x384xf32>
    %cst_36 = arith.constant 1.000000e+00 : f32
    %107 = vector.broadcast %cst_36 : f32 to vector<8x384xf32>
    %108 = arith.addf %107, %106 : vector<8x384xf32>
    %109 = arith.divf %107, %108 : vector<8x384xf32>
    %110 = vector.extract_strided_slice %103 {offsets = [0, 384], sizes = [8, 128], strides = [1, 1]} : vector<8x512xf32> to vector<8x128xf32>
    %111 = math.tanh %110 : vector<8x128xf32>
    %112 = vector.extract_strided_slice %109 {offsets = [0, 0], sizes = [8, 128], strides = [1, 1]} : vector<8x384xf32> to vector<8x128xf32>
    %113 = vector.extract_strided_slice %109 {offsets = [0, 128], sizes = [8, 128], strides = [1, 1]} : vector<8x384xf32> to vector<8x128xf32>
    %114 = vector.extract_strided_slice %109 {offsets = [0, 256], sizes = [8, 128], strides = [1, 1]} : vector<8x384xf32> to vector<8x128xf32>
    %115 = arith.mulf %113, %96 : vector<8x128xf32>
    %116 = arith.mulf %112, %111 : vector<8x128xf32>
    %117 = arith.addf %115, %116 : vector<8x128xf32>
    %118 = math.tanh %117 : vector<8x128xf32>
    %119 = arith.mulf %114, %118 : vector<8x128xf32>
    %c5_i32 = arith.constant 5 : i32
    %120 = arith.index_cast %c5_i32 : i32 to index
    %c0_37 = arith.constant 0 : index
    %c0_38 = arith.constant 0 : index
    %121 = vector.load %arg11[%120, %c0_37, %c0_38] : memref<8x8x512xf32, #tpu.memory_space<vmem>>, vector<1x8x512xf32>
    %122 = vector.shape_cast %121 : vector<1x8x512xf32> to vector<8x512xf32>
    %cst_39 = arith.constant dense<0.000000e+00> : vector<8x512xf32>
    %123 = tpu.matmul %119, %12, %cst_39 {dimension_numbers = #tpu.dot_dimension_numbers<[1], [0], [0], [1], [0, 0, 1, 1], [], []>} : vector<8x128xf32>, vector<128x512xf32>, vector<8x512xf32> -> vector<8x512xf32>
    %124 = arith.addf %122, %123 : vector<8x512xf32>
    %125 = vector.extract_strided_slice %124 {offsets = [0, 0], sizes = [8, 384], strides = [1, 1]} : vector<8x512xf32> to vector<8x384xf32>
    %126 = arith.negf %125 : vector<8x384xf32>
    %127 = math.exp %126 : vector<8x384xf32>
    %cst_40 = arith.constant 1.000000e+00 : f32
    %128 = vector.broadcast %cst_40 : f32 to vector<8x384xf32>
    %129 = arith.addf %128, %127 : vector<8x384xf32>
    %130 = arith.divf %128, %129 : vector<8x384xf32>
    %131 = vector.extract_strided_slice %124 {offsets = [0, 384], sizes = [8, 128], strides = [1, 1]} : vector<8x512xf32> to vector<8x128xf32>
    %132 = math.tanh %131 : vector<8x128xf32>
    %133 = vector.extract_strided_slice %130 {offsets = [0, 0], sizes = [8, 128], strides = [1, 1]} : vector<8x384xf32> to vector<8x128xf32>
    %134 = vector.extract_strided_slice %130 {offsets = [0, 128], sizes = [8, 128], strides = [1, 1]} : vector<8x384xf32> to vector<8x128xf32>
    %135 = vector.extract_strided_slice %130 {offsets = [0, 256], sizes = [8, 128], strides = [1, 1]} : vector<8x384xf32> to vector<8x128xf32>
    %136 = arith.mulf %134, %117 : vector<8x128xf32>
    %137 = arith.mulf %133, %132 : vector<8x128xf32>
    %138 = arith.addf %136, %137 : vector<8x128xf32>
    %139 = math.tanh %138 : vector<8x128xf32>
    %140 = arith.mulf %135, %139 : vector<8x128xf32>
    %c6_i32 = arith.constant 6 : i32
    %141 = arith.index_cast %c6_i32 : i32 to index
    %c0_41 = arith.constant 0 : index
    %c0_42 = arith.constant 0 : index
    %142 = vector.load %arg11[%141, %c0_41, %c0_42] : memref<8x8x512xf32, #tpu.memory_space<vmem>>, vector<1x8x512xf32>
    %143 = vector.shape_cast %142 : vector<1x8x512xf32> to vector<8x512xf32>
    %cst_43 = arith.constant dense<0.000000e+00> : vector<8x512xf32>
    %144 = tpu.matmul %140, %12, %cst_43 {dimension_numbers = #tpu.dot_dimension_numbers<[1], [0], [0], [1], [0, 0, 1, 1], [], []>} : vector<8x128xf32>, vector<128x512xf32>, vector<8x512xf32> -> vector<8x512xf32>
    %145 = arith.addf %143, %144 : vector<8x512xf32>
    %146 = vector.extract_strided_slice %145 {offsets = [0, 0], sizes = [8, 384], strides = [1, 1]} : vector<8x512xf32> to vector<8x384xf32>
    %147 = arith.negf %146 : vector<8x384xf32>
    %148 = math.exp %147 : vector<8x384xf32>
    %cst_44 = arith.constant 1.000000e+00 : f32
    %149 = vector.broadcast %cst_44 : f32 to vector<8x384xf32>
    %150 = arith.addf %149, %148 : vector<8x384xf32>
    %151 = arith.divf %149, %150 : vector<8x384xf32>
    %152 = vector.extract_strided_slice %145 {offsets = [0, 384], sizes = [8, 128], strides = [1, 1]} : vector<8x512xf32> to vector<8x128xf32>
    %153 = math.tanh %152 : vector<8x128xf32>
    %154 = vector.extract_strided_slice %151 {offsets = [0, 0], sizes = [8, 128], strides = [1, 1]} : vector<8x384xf32> to vector<8x128xf32>
    %155 = vector.extract_strided_slice %151 {offsets = [0, 128], sizes = [8, 128], strides = [1, 1]} : vector<8x384xf32> to vector<8x128xf32>
    %156 = vector.extract_strided_slice %151 {offsets = [0, 256], sizes = [8, 128], strides = [1, 1]} : vector<8x384xf32> to vector<8x128xf32>
    %157 = arith.mulf %155, %138 : vector<8x128xf32>
    %158 = arith.mulf %154, %153 : vector<8x128xf32>
    %159 = arith.addf %157, %158 : vector<8x128xf32>
    %160 = math.tanh %159 : vector<8x128xf32>
    %161 = arith.mulf %156, %160 : vector<8x128xf32>
    %c7_i32 = arith.constant 7 : i32
    %162 = arith.index_cast %c7_i32 : i32 to index
    %c0_45 = arith.constant 0 : index
    %c0_46 = arith.constant 0 : index
    %163 = vector.load %arg11[%162, %c0_45, %c0_46] : memref<8x8x512xf32, #tpu.memory_space<vmem>>, vector<1x8x512xf32>
    %164 = vector.shape_cast %163 : vector<1x8x512xf32> to vector<8x512xf32>
    %cst_47 = arith.constant dense<0.000000e+00> : vector<8x512xf32>
    %165 = tpu.matmul %161, %12, %cst_47 {dimension_numbers = #tpu.dot_dimension_numbers<[1], [0], [0], [1], [0, 0, 1, 1], [], []>} : vector<8x128xf32>, vector<128x512xf32>, vector<8x512xf32> -> vector<8x512xf32>
    %166 = arith.addf %164, %165 : vector<8x512xf32>
    %167 = vector.extract_strided_slice %166 {offsets = [0, 0], sizes = [8, 384], strides = [1, 1]} : vector<8x512xf32> to vector<8x384xf32>
    %168 = arith.negf %167 : vector<8x384xf32>
    %169 = math.exp %168 : vector<8x384xf32>
    %cst_48 = arith.constant 1.000000e+00 : f32
    %170 = vector.broadcast %cst_48 : f32 to vector<8x384xf32>
    %171 = arith.addf %170, %169 : vector<8x384xf32>
    %172 = arith.divf %170, %171 : vector<8x384xf32>
    %173 = vector.extract_strided_slice %166 {offsets = [0, 384], sizes = [8, 128], strides = [1, 1]} : vector<8x512xf32> to vector<8x128xf32>
    %174 = math.tanh %173 : vector<8x128xf32>
    %175 = vector.extract_strided_slice %172 {offsets = [0, 0], sizes = [8, 128], strides = [1, 1]} : vector<8x384xf32> to vector<8x128xf32>
    %176 = vector.extract_strided_slice %172 {offsets = [0, 128], sizes = [8, 128], strides = [1, 1]} : vector<8x384xf32> to vector<8x128xf32>
    %177 = vector.extract_strided_slice %172 {offsets = [0, 256], sizes = [8, 128], strides = [1, 1]} : vector<8x384xf32> to vector<8x128xf32>
    %178 = arith.mulf %176, %159 : vector<8x128xf32>
    %179 = arith.mulf %175, %174 : vector<8x128xf32>
    %180 = arith.addf %178, %179 : vector<8x128xf32>
    %181 = math.tanh %180 : vector<8x128xf32>
    %182 = arith.mulf %177, %181 : vector<8x128xf32>
    %c8_i32 = arith.constant 8 : i32
    %c0_49 = arith.constant 0 : index
    %c0_50 = arith.constant 0 : index
    %183 = vector.load %arg9[%c0_49, %c0_50] : memref<8x128xf32, #tpu.memory_space<vmem>>, vector<8x128xf32>
    tpu.vector_store %arg9[%c0_49, %c0_50], %182 {strides = array<i32>} : memref<8x128xf32, #tpu.memory_space<vmem>>, vector<8x128xf32>,
    %c0_51 = arith.constant 0 : index
    %c0_52 = arith.constant 0 : index
    %184 = vector.load %arg10[%c0_51, %c0_52] : memref<8x128xf32, #tpu.memory_space<vmem>>, vector<8x128xf32>
    tpu.vector_store %arg10[%c0_51, %c0_52], %180 {strides = array<i32>} : memref<8x128xf32, #tpu.memory_space<vmem>>, vector<8x128xf32>,
    %c0_i32_53 = arith.constant 0 : i32
    %185 = arith.cmpi eq, %arg1, %c0_i32_53 : i32
    %186 = arith.extui %185 : i1 to i32
    %c0_i32_54 = arith.constant 0 : i32
    %187 = arith.cmpi ne, %186, %c0_i32_54 : i32
    scf.if %187 {
      %c0_55 = arith.constant 0 : index
      %c0_56 = arith.constant 0 : index
      %188 = vector.load %arg6[%c0_55, %c0_56] : memref<1x128xf32, #tpu.memory_space<vmem>>, vector<1x128xf32>
      %189 = vector.broadcast %188 : vector<1x128xf32> to vector<8x128xf32>
      %190 = arith.mulf %182, %189 : vector<8x128xf32>
      %cst_57 = arith.constant dense<0.000000e+00> : vector<8xf32>
      %191 = vector.multi_reduction <add>, %190, %cst_57 [1] : vector<8x128xf32> to vector<8xf32>
      %192 = vector.shape_cast %191 : vector<8xf32> to vector<8x1xf32>
      %c0_58 = arith.constant 0 : index
      %c0_59 = arith.constant 0 : index
      %193 = vector.load %arg7[%c0_58, %c0_59] : memref<1x1xf32, #tpu.memory_space<vmem>>, vector<1x1xf32>
      %194 = vector.broadcast %193 : vector<1x1xf32> to vector<8x1xf32>
      %195 = arith.addf %192, %194 : vector<8x1xf32>
      %196 = arith.negf %195 : vector<8x1xf32>
      %197 = math.exp %196 : vector<8x1xf32>
      %cst_60 = arith.constant 1.000000e+00 : f32
      %198 = vector.broadcast %cst_60 : f32 to vector<8x1xf32>
      %199 = arith.addf %198, %197 : vector<8x1xf32>
      %200 = arith.divf %198, %199 : vector<8x1xf32>
      %c0_61 = arith.constant 0 : index
      %c0_62 = arith.constant 0 : index
      %201 = vector.load %arg8[%c0_61, %c0_62] : memref<8x1xf32, #tpu.memory_space<vmem>>, vector<8x1xf32>
      tpu.vector_store %arg8[%c0_61, %c0_62], %200 {strides = array<i32>} : memref<8x1xf32, #tpu.memory_space<vmem>>, vector<8x1xf32>,
    } else {
    }
    return
  }
  func.func @transform_0(%arg0: i32, %arg1: i32) -> (i32, i32, i32) {
    %c0_i32 = arith.constant 0 : i32
    %c0_i32_0 = arith.constant 0 : i32
    return %arg1, %arg0, %c0_i32 : i32, i32, i32
  }
  func.func @transform_1(%arg0: i32, %arg1: i32) -> (i32, i32) {
    %c0_i32 = arith.constant 0 : i32
    %c0_i32_0 = arith.constant 0 : i32
    %c0_i32_1 = arith.constant 0 : i32
    return %c0_i32, %c0_i32_0 : i32, i32
  }
  func.func @transform_2(%arg0: i32, %arg1: i32) -> (i32, i32) {
    %c0_i32 = arith.constant 0 : i32
    %c0_i32_0 = arith.constant 0 : i32
    %c0_i32_1 = arith.constant 0 : i32
    return %c0_i32, %c0_i32_0 : i32, i32
  }
  func.func @transform_3(%arg0: i32, %arg1: i32) -> (i32, i32) {
    %c0_i32 = arith.constant 0 : i32
    %c0_i32_0 = arith.constant 0 : i32
    %c0_i32_1 = arith.constant 0 : i32
    return %c0_i32, %c0_i32_0 : i32, i32
  }
  func.func @transform_4(%arg0: i32, %arg1: i32) -> (i32, i32) {
    %c0_i32 = arith.constant 0 : i32
    %c0_i32_0 = arith.constant 0 : i32
    %c0_i32_1 = arith.constant 0 : i32
    return %c0_i32, %c0_i32_0 : i32, i32
  }
  func.func @transform_5(%arg0: i32, %arg1: i32) -> (i32, i32) {
    %c0_i32 = arith.constant 0 : i32
    %c0_i32_0 = arith.constant 0 : i32
    %c0_i32_1 = arith.constant 0 : i32
    return %c0_i32, %c0_i32_0 : i32, i32
  }
  func.func @transform_6(%arg0: i32, %arg1: i32) -> (i32, i32) {
    %c0_i32 = arith.constant 0 : i32
    %c0_i32_0 = arith.constant 0 : i32
    return %arg0, %c0_i32 : i32, i32
  }
}

</mosaic_0001>

<llo_original>
// kernel: tpu_custom_call.1
$region0: #{tpu_custom_call.1}
  #allocation0 [shape = 'u32[]', space=smem, size = 0x4, offset = 0x4, fixed_abs, tag = 'smem constant byte address 0x4 - core index']
  #allocation1 [shape = 'u32[144,128]{1,0:T(1,128)}', space=vmem, size = 0x12000, scoped, tag = 'internal scratch']
  #allocation2 [shape = 'f32[8,128]{1,0:T(8,128)}', space=vmem, size = 0x1000, scoped, tag = 'scratch operand']
  #allocation3 [shape = 'f32[8,128]{1,0:T(8,128)}', space=vmem, size = 0x1000, scoped, tag = 'scratch operand']
  #allocation4 [shape = 'f32[8,8,512]{2,1,0:T(8,128)}', space=vmem, size = 0x20000, scoped, tag = 'scratch operand']
  #allocation5 [shape = 'f32[1,1]{1,0:T(1,128)S(1)}', space=vmem, size = 0x200, scoped, tag = 'scoped memory for tpu_custom_call.1']
  %s0 = inlined_call_operand.hbm [shape: bf16[8,8,16], index: 0, kind: input, shape index: {}]
  %s1 = inlined_call_operand.hbm [shape: bf16[16,512], index: 1, kind: input, shape index: {}]
  %s2 = inlined_call_operand.hbm [shape: f32[128,512], index: 2, kind: input, shape index: {}]
  %s3 = inlined_call_operand.vmem [shape: f32[1,512], index: 3, kind: input, shape index: {}]
  %s4 = inlined_call_operand.vmem [shape: f32[1,128], index: 4, kind: input, shape index: {}]
  %s5 = inlined_call_operand.<no memory space> [shape: f32[1,1], index: 5, kind: input, shape index: {}]
  %s6 = inlined_call_operand.vmem [shape: f32[8,1], index: 6, kind: output, shape index: {}]
  %s7 = sld [smem:[#allocation0]]
  $region54: #{tpu_custom_call.1} parent=0
    _
  %s9 = ssub.s32 1, %s7
  %s10 = scalar_select 0, %s9, %s7
  %v11 = vstv %s5
  %12 = vst [vmem:[#allocation5] sm:$0x1] %v11
  $region1: #{tpu_custom_call.1} parent=0
    #allocation6 [shape = 'u8[16384]{0}', space=vmem, size = 0x4000, scoped, tag = 'input window, operand 0, single buffered']
    #allocation7 [shape = 's32[1]{0}', space=sflag, size = 0x4, scoped, tag = 'scoped memory for tpu_custom_call.1']
    #allocation8 [shape = 'u8[16384]{0}', space=vmem, size = 0x4000, scoped, tag = 'input window, operand 1, single buffered']
    #allocation9 [shape = 's32[1]{0}', space=sflag, size = 0x4, scoped, tag = 'scoped memory for tpu_custom_call.1']
    #allocation10 [shape = 'u8[262144]{0}', space=vmem, size = 0x40000, scoped, tag = 'input window, operand 2, single buffered']
    %13 = vsyncpa [#allocation7], 0
    %14 = vsyncpa [#allocation9], 0
    // Predicated region
    $region2: #{tpu_custom_call.1} parent=1 // pred_check
      _
    $region3: #{tpu_custom_call.1} parent=1 // pred_check_branch
      %16 = sbr.rel (0) target = $region5
    $region4: #{tpu_custom_call.1} parent=1 // pred_region
      %s18 = ssub.s32 512, 512
      %19 = vsyncadd [#allocation7], %s18
      %s20 = sshll.u32 [#allocation6], 4
      %s21 = int_to_ptr.vmem [resolvable:$true] %s20
      %26 = dma.hbm_to_vmem [thread:$0]  %s0, 512, %s21, [#allocation7], 64, 64, 4
    $region5: #{tpu_custom_call.1} parent=1 // pred_fallthru
      _
    // Predicated region
    $region6: #{tpu_custom_call.1} parent=1 // pred_check
      _
    $region7: #{tpu_custom_call.1} parent=1 // pred_check_branch
      %28 = sbr.rel (0) target = $region9
    $region8: #{tpu_custom_call.1} parent=1 // pred_region
      %s30 = ssub.s32 512, 512
      %31 = vsyncadd [#allocation9], %s30
      %s32 = sshll.u32 [#allocation8], 4
      %s33 = int_to_ptr.vmem [resolvable:$true] %s32
      %38 = dma.hbm_to_vmem [thread:$0]  %s1, 512, %s33, [#allocation9], 256, 256, 16
    $region9: #{tpu_custom_call.1} parent=1 // pred_fallthru
      _
    // Predicated region
    $region10: #{tpu_custom_call.1} parent=1 // pred_check
      _
    $region11: #{tpu_custom_call.1} parent=1 // pred_check_branch
      %40 = sbr.rel (0) target = $region13
    $region12: #{tpu_custom_call.1} parent=1 // pred_region
      %s42 = ssub.s32 8192, 8192
      %43 = vsyncadd [#allocation9], %s42
      %s44 = sshll.u32 [#allocation10], 4
      %s45 = int_to_ptr.vmem [resolvable:$true] %s44
      %50 = dma.hbm_to_vmem [thread:$0]  %s2, 8192, %s45, [#allocation9], 512, 512, 32
    $region13: #{tpu_custom_call.1} parent=1 // pred_fallthru
      _
    // Predicated region
    $region14: #{tpu_custom_call.1} parent=1 // pred_check
      _
    $region15: #{tpu_custom_call.1} parent=1 // pred_check_branch
      %52 = sbr.rel (0) target = $region17
    $region16: #{tpu_custom_call.1} parent=1 // pred_region
      _
    $region17: #{tpu_custom_call.1} parent=1 // pred_fallthru
      _
    // Predicated region
    $region18: #{tpu_custom_call.1} parent=1 // pred_check
      _
    $region19: #{tpu_custom_call.1} parent=1 // pred_check_branch
      %54 = sbr.rel (0) target = $region21
    $region20: #{tpu_custom_call.1} parent=1 // pred_region
      _
    $region21: #{tpu_custom_call.1} parent=1 // pred_fallthru
      _
    // Predicated region
    $region22: #{tpu_custom_call.1} parent=1 // pred_check
      _
    $region23: #{tpu_custom_call.1} parent=1 // pred_check_branch
      %56 = sbr.rel (0) target = $region25
    $region24: #{tpu_custom_call.1} parent=1 // pred_region
      _
    $region25: #{tpu_custom_call.1} parent=1 // pred_fallthru
      _
    // Predicated region
    $region26: #{tpu_custom_call.1} parent=1 // pred_check
      _
    $region27: #{tpu_custom_call.1} parent=1 // pred_check_branch
      %58 = sbr.rel (0) target = $region29
    $region28: #{tpu_custom_call.1} parent=1 // pred_region
      %59 = dma.done [#allocation7], 512
    $region29: #{tpu_custom_call.1} parent=1 // pred_fallthru
      _
    // Predicated region
    $region30: #{tpu_custom_call.1} parent=1 // pred_check
      _
    $region31: #{tpu_custom_call.1} parent=1 // pred_check_branch
      %61 = sbr.rel (0) target = $region33
    $region32: #{tpu_custom_call.1} parent=1 // pred_region
      %62 = dma.done [#allocation9], 512
    $region33: #{tpu_custom_call.1} parent=1 // pred_fallthru
      _
    // Predicated region
    $region34: #{tpu_custom_call.1} parent=1 // pred_check
      _
    $region35: #{tpu_custom_call.1} parent=1 // pred_check_branch
      %64 = sbr.rel (0) target = $region37
    $region36: #{tpu_custom_call.1} parent=1 // pred_region
      %65 = dma.done [#allocation9], 8192
    $region37: #{tpu_custom_call.1} parent=1 // pred_fallthru
      _
    %p67 = scmp.eq.s32.totalorder 0, 0
    // Predicated region
    $region38: #{tpu_custom_call.1} parent=1 // pred_check
      %p68 = pneg %p67
    $region39: #{tpu_custom_call.1} parent=1 // pred_check_branch
      %70 = sbr.rel (%p68) target = $region41
    $region40: #{tpu_custom_call.1} parent=1 // pred_region
      %71 = vst [vmem:[#allocation2] sm:$0xff] 0.0
      %72 = vst [vmem:[#allocation3] sm:$0xff] 0.0
    $region41: #{tpu_custom_call.1} parent=1 // pred_fallthru
      _
    %v73 = vld [vmem:[#allocation6] sm:$0xf]
    %v74 = vld [vmem:[#allocation6 + $0x4] sm:$0xf]
    %v75 = vld [vmem:[#allocation6 + $0x8] sm:$0xf]
    %v76 = vld [vmem:[#allocation6 + $0xc] sm:$0xf]
    %v77 = vld [vmem:[#allocation6 + $0x10] sm:$0xf]
    %v78 = vld [vmem:[#allocation6 + $0x14] sm:$0xf]
    %v79 = vld [vmem:[#allocation6 + $0x18] sm:$0xf]
    %v80 = vld [vmem:[#allocation6 + $0x1c] sm:$0xf]
    %v81 = vld [vmem:[#allocation8] sm:$0xff]
    %v82 = vld [vmem:[#allocation8 + $0x8] sm:$0xff]
    %v83 = vld [vmem:[#allocation8 + $0x10] sm:$0xff]
    %v84 = vld [vmem:[#allocation8 + $0x18] sm:$0xff]
    %v85 = vld [vmem:[%s3] sm:$0xf]
    %v87 = vlaneseq
    %v88 = vshrl.u32 %v87, 7
    %v89 = vsub.s32 0, %v88
    %v90 = vrot.slane %v85, %v89
    %v91 = vlaneseq
    %v92 = vshrl.u32 %v91, 7
    %v93 = vsub.s32 1, %v92
    %v94 = vrot.slane %v85, %v93
    %v95 = vlaneseq
    %v96 = vshrl.u32 %v95, 7
    %v97 = vsub.s32 2, %v96
    %v98 = vrot.slane %v85, %v97
    %v99 = vlaneseq
    %v100 = vshrl.u32 %v99, 7
    %v101 = vsub.s32 3, %v100
    %v102 = vrot.slane %v85, %v101
    %v115 = vunpack.c.l.b16 %v73
    %v116 = vunpack.c.l.b16 %v74
    %v117 = vunpack.c.l.b16 %v75
    %v118 = vunpack.c.l.b16 %v76
    %v119 = vunpack.c.l.b16 %v77
    %v120 = vunpack.c.l.b16 %v78
    %v121 = vunpack.c.l.b16 %v79
    %v122 = vunpack.c.l.b16 %v80
    %v123 = vpack.c.b16 %v116, %v115
    %v124 = vpack.c.b16 %v118, %v117
    %v125 = vpack.c.b16 %v120, %v119
    %v126 = vpack.c.b16 %v122, %v121
    %v131 = vunpack.c.l.b16 %v81
    %v132 = vunpack.c.h.b16 %v81
    %v133 = vunpack.c.l.b16 %v82
    %v134 = vunpack.c.h.b16 %v82
    %v135 = vunpack.c.l.b16 %v83
    %v136 = vunpack.c.h.b16 %v83
    %v137 = vunpack.c.l.b16 %v84
    %v138 = vunpack.c.h.b16 %v84
    %v139 = vpack.c.b16 %v135, %v131
    %v140 = vpack.c.b16 %v136, %v132
    %v141 = vpack.c.b16 %v137, %v133
    %v142 = vpack.c.b16 %v138, %v134
    %vm147 = vcmask 130048
    %v149 = vsel %vm147, %v123, 0
    %v152 = vsel %vm147, %v124, 0
    %v155 = vsel %vm147, %v125, 0
    %v158 = vsel %vm147, %v126, 0
    %160 = vmatprep.subr.bf16.mxu0 %v140
    %161 = vmatpush1.bf16.msra.mxu0 %v139
    %162 = vmatprep.subr.bf16.mxu0 0
    %163 = vmatpush1.bf16.msra.mxu0 0
    %164 = vmatprep.subr.bf16.mxu0 0
    %165 = vmatpush1.bf16.msra.mxu0 0
    %166 = vmatprep.subr.bf16.mxu0 0
    %167 = vmatpush1.bf16.msra.mxu0 0
    %168 = vmatprep.subr.bf16.mxu0 0
    %169 = vmatpush1.bf16.msra.mxu0 0
    %170 = vmatprep.subr.bf16.mxu0 0
    %171 = vmatpush1.bf16.msra.mxu0 0
    %172 = vmatprep.subr.bf16.mxu0 0
    %173 = vmatpush1.bf16.msra.mxu0 0
    %174 = vmatprep.subr.bf16.mxu0 0
    %175 = vmatpush1.bf16.msra.mxu0 0
    %176 = vmatprep.subr.bf16.mxu0 0
    %177 = vmatpush1.bf16.msra.mxu0 0
    %178 = vmatprep.subr.bf16.mxu0 0
    %179 = vmatpush1.bf16.msra.mxu0 0
    %180 = vmatprep.subr.bf16.mxu0 0
    %181 = vmatpush1.bf16.msra.mxu0 0
    %182 = vmatprep.subr.bf16.mxu0 0
    %183 = vmatpush1.bf16.msra.mxu0 0
    %184 = vmatprep.subr.bf16.mxu0 0
    %185 = vmatpush1.bf16.msra.mxu0 0
    %186 = vmatprep.subr.bf16.mxu0 0
    %187 = vmatpush1.bf16.msra.mxu0 0
    %188 = vmatprep.subr.bf16.mxu0 0
    %189 = vmatpush1.bf16.msra.mxu0 0
    %190 = vmatprep.subr.bf16.mxu0 0
    %191 = vmatpush1.bf16.msra.mxu0 0
    %192 = vmatprep.mubr.bf16.mxu0 0
    %193 = vmatmul.mubr.bf16.gmra.mrb[0].mxu0 %v149
    %v194 = vpop.f32.mrb[0].mxu0
    %v195 = vadd.f32 %v90, %v194
    %v196 = vpop.f32.mrb[0].mxu0
    %v197 = vadd.f32 %v94, %v196
    %v198 = vpop.f32.mrb[0].mxu0
    %v199 = vadd.f32 %v90, %v198
    %v200 = vpop.f32.mrb[0].mxu0
    %v201 = vadd.f32 %v94, %v200
    %202 = vmatprep.mubr.bf16.mxu0 0
    %203 = vmatmul.mubr.bf16.gmra.mrb[0].mxu0 %v152
    %v204 = vpop.f32.mrb[0].mxu0
    %v205 = vadd.f32 %v90, %v204
    %v206 = vpop.f32.mrb[0].mxu0
    %v207 = vadd.f32 %v94, %v206
    %v208 = vpop.f32.mrb[0].mxu0
    %v209 = vadd.f32 %v90, %v208
    %v210 = vpop.f32.mrb[0].mxu0
    %v211 = vadd.f32 %v94, %v210
    %212 = vmatprep.mubr.bf16.mxu0 0
    %213 = vmatmul.mubr.bf16.gmra.mrb[0].mxu0 %v155
    %v214 = vpop.f32.mrb[0].mxu0
    %v215 = vadd.f32 %v90, %v214
    %v216 = vpop.f32.mrb[0].mxu0
    %v217 = vadd.f32 %v94, %v216
    %v218 = vpop.f32.mrb[0].mxu0
    %v219 = vadd.f32 %v90, %v218
    %v220 = vpop.f32.mrb[0].mxu0
    %v221 = vadd.f32 %v94, %v220
    %222 = vmatprep.mubr.bf16.mxu0 0
    %223 = vmatmul.mubr.bf16.gmra.mrb[0].mxu0 %v158
    %v224 = vpop.f32.mrb[0].mxu0
    %v225 = vadd.f32 %v90, %v224
    %v226 = vpop.f32.mrb[0].mxu0
    %v227 = vadd.f32 %v94, %v226
    %v228 = vpop.f32.mrb[0].mxu0
    %v229 = vadd.f32 %v90, %v228
    %v230 = vpop.f32.mrb[0].mxu0
    %v231 = vadd.f32 %v94, %v230
    %232 = vdwg.mxu0
    %233 = vmatprep.subr.bf16.mxu0 %v142
    %234 = vmatpush1.bf16.msra.mxu0 %v141
    %235 = vmatprep.subr.bf16.mxu0 0
    %236 = vmatpush1.bf16.msra.mxu0 0
    %237 = vmatprep.subr.bf16.mxu0 0
    %238 = vmatpush1.bf16.msra.mxu0 0
    %239 = vmatprep.subr.bf16.mxu0 0
    %240 = vmatpush1.bf16.msra.mxu0 0
    %241 = vmatprep.subr.bf16.mxu0 0
    %242 = vmatpush1.bf16.msra.mxu0 0
    %243 = vmatprep.subr.bf16.mxu0 0
    %244 = vmatpush1.bf16.msra.mxu0 0
    %245 = vmatprep.subr.bf16.mxu0 0
    %246 = vmatpush1.bf16.msra.mxu0 0
    %247 = vmatprep.subr.bf16.mxu0 0
    %248 = vmatpush1.bf16.msra.mxu0 0
    %249 = vmatprep.subr.bf16.mxu0 0
    %250 = vmatpush1.bf16.msra.mxu0 0
    %251 = vmatprep.subr.bf16.mxu0 0
    %252 = vmatpush1.bf16.msra.mxu0 0
    %253 = vmatprep.subr.bf16.mxu0 0
    %254 = vmatpush1.bf16.msra.mxu0 0
    %255 = vmatprep.subr.bf16.mxu0 0
    %256 = vmatpush1.bf16.msra.mxu0 0
    %257 = vmatprep.subr.bf16.mxu0 0
    %258 = vmatpush1.bf16.msra.mxu0 0
    %259 = vmatprep.subr.bf16.mxu0 0
    %260 = vmatpush1.bf16.msra.mxu0 0
    %261 = vmatprep.subr.bf16.mxu0 0
    %262 = vmatpush1.bf16.msra.mxu0 0
    %263 = vmatprep.subr.bf16.mxu0 0
    %264 = vmatpush1.bf16.msra.mxu0 0
    %265 = vmatprep.mubr.bf16.mxu0 0
    %266 = vmatmul.mubr.bf16.gmra.mrb[0].mxu0 %v149
    %v267 = vpop.f32.mrb[0].mxu0
    %v268 = vadd.f32 %v98, %v267
    %v269 = vpop.f32.mrb[0].mxu0
    %v270 = vadd.f32 %v102, %v269
    %v271 = vpop.f32.mrb[0].mxu0
    %v272 = vadd.f32 %v98, %v271
    %v273 = vpop.f32.mrb[0].mxu0
    %v274 = vadd.f32 %v102, %v273
    %275 = vmatprep.mubr.bf16.mxu0 0
    %276 = vmatmul.mubr.bf16.gmra.mrb[0].mxu0 %v152
    %v277 = vpop.f32.mrb[0].mxu0
    %v278 = vadd.f32 %v98, %v277
    %v279 = vpop.f32.mrb[0].mxu0
    %v280 = vadd.f32 %v102, %v279
    %v281 = vpop.f32.mrb[0].mxu0
    %v282 = vadd.f32 %v98, %v281
    %v283 = vpop.f32.mrb[0].mxu0
    %v284 = vadd.f32 %v102, %v283
    %285 = vmatprep.mubr.bf16.mxu0 0
    %286 = vmatmul.mubr.bf16.gmra.mrb[0].mxu0 %v155
    %v287 = vpop.f32.mrb[0].mxu0
    %v288 = vadd.f32 %v98, %v287
    %v289 = vpop.f32.mrb[0].mxu0
    %v290 = vadd.f32 %v102, %v289
    %v291 = vpop.f32.mrb[0].mxu0
    %v292 = vadd.f32 %v98, %v291
    %v293 = vpop.f32.mrb[0].mxu0
    %v294 = vadd.f32 %v102, %v293
    %295 = vmatprep.mubr.bf16.mxu0 0
    %296 = vmatmul.mubr.bf16.gmra.mrb[0].mxu0 %v158
    %v297 = vpop.f32.mrb[0].mxu0
    %v298 = vadd.f32 %v98, %v297
    %v299 = vpop.f32.mrb[0].mxu0
    %v300 = vadd.f32 %v102, %v299
    %v301 = vpop.f32.mrb[0].mxu0
    %v302 = vadd.f32 %v98, %v301
    %v303 = vpop.f32.mrb[0].mxu0
    %v304 = vadd.f32 %v102, %v303
    %305 = vdwg.mxu0
    %306 = vst [vmem:[#allocation4] sm:$0xff] %v195
    %307 = vst [vmem:[#allocation4 + $0x8] sm:$0xff] %v197
    %308 = vst [vmem:[#allocation4 + $0x10] sm:$0xff] %v268
    %309 = vst [vmem:[#allocation4 + $0x18] sm:$0xff] %v270
    %310 = vst [vmem:[#allocation4 + $0x20] sm:$0xff] %v199
    %311 = vst [vmem:[#allocation4 + $0x28] sm:$0xff] %v201
    %312 = vst [vmem:[#allocation4 + $0x30] sm:$0xff] %v272
    %313 = vst [vmem:[#allocation4 + $0x38] sm:$0xff] %v274
    %314 = vst [vmem:[#allocation4 + $0x40] sm:$0xff] %v205
    %315 = vst [vmem:[#allocation4 + $0x48] sm:$0xff] %v207
    %316 = vst [vmem:[#allocation4 + $0x50] sm:$0xff] %v278
    %317 = vst [vmem:[#allocation4 + $0x58] sm:$0xff] %v280
    %318 = vst [vmem:[#allocation4 + $0x60] sm:$0xff] %v209
    %319 = vst [vmem:[#allocation4 + $0x68] sm:$0xff] %v211
    %320 = vst [vmem:[#allocation4 + $0x70] sm:$0xff] %v282
    %321 = vst [vmem:[#allocation4 + $0x78] sm:$0xff] %v284
    %322 = vst [vmem:[#allocation4 + $0x80] sm:$0xff] %v215
    %323 = vst [vmem:[#allocation4 + $0x88] sm:$0xff] %v217
    %324 = vst [vmem:[#allocation4 + $0x90] sm:$0xff] %v288
    %325 = vst [vmem:[#allocation4 + $0x98] sm:$0xff] %v290
    %326 = vst [vmem:[#allocation4 + $0xa0] sm:$0xff] %v219
    %327 = vst [vmem:[#allocation4 + $0xa8] sm:$0xff] %v221
    %328 = vst [vmem:[#allocation4 + $0xb0] sm:$0xff] %v292
    %329 = vst [vmem:[#allocation4 + $0xb8] sm:$0xff] %v294
    %330 = vst [vmem:[#allocation4 + $0xc0] sm:$0xff] %v225
    %331 = vst [vmem:[#allocation4 + $0xc8] sm:$0xff] %v227
    %332 = vst [vmem:[#allocation4 + $0xd0] sm:$0xff] %v298
    %333 = vst [vmem:[#allocation4 + $0xd8] sm:$0xff] %v300
    %334 = vst [vmem:[#allocation4 + $0xe0] sm:$0xff] %v229
    %335 = vst [vmem:[#allocation4 + $0xe8] sm:$0xff] %v231
    %336 = vst [vmem:[#allocation4 + $0xf0] sm:$0xff] %v302
    %337 = vst [vmem:[#allocation4 + $0xf8] sm:$0xff] %v304
    %v338 = vld [vmem:[#allocation10] sm:$0xff]
    %v339 = vld [vmem:[#allocation10 + $0x8] sm:$0xff]
    %v340 = vld [vmem:[#allocation10 + $0x10] sm:$0xff]
    %v341 = vld [vmem:[#allocation10 + $0x18] sm:$0xff]
    %v342 = vld [vmem:[#allocation10 + $0x20] sm:$0xff]
    %v343 = vld [vmem:[#allocation10 + $0x28] sm:$0xff]
    %v344 = vld [vmem:[#allocation10 + $0x30] sm:$0xff]
    %v345 = vld [vmem:[#allocation10 + $0x38] sm:$0xff]
    %v346 = vld [vmem:[#allocation10 + $0x40] sm:$0xff]
    %v347 = vld [vmem:[#allocation10 + $0x48] sm:$0xff]
    %v348 = vld [vmem:[#allocation10 + $0x50] sm:$0xff]
    %v349 = vld [vmem:[#allocation10 + $0x58] sm:$0xff]
    %v350 = vld [vmem:[#allocation10 + $0x60] sm:$0xff]
    %v351 = vld [vmem:[#allocation10 + $0x68] sm:$0xff]
    %v352 = vld [vmem:[#allocation10 + $0x70] sm:$0xff]
    %v353 = vld [vmem:[#allocation10 + $0x78] sm:$0xff]
    %v354 = vld [vmem:[#allocation10 + $0x80] sm:$0xff]
    %v355 = vld [vmem:[#allocation10 + $0x88] sm:$0xff]
    %v356 = vld [vmem:[#allocation10 + $0x90] sm:$0xff]
    %v357 = vld [vmem:[#allocation10 + $0x98] sm:$0xff]
    %v358 = vld [vmem:[#allocation10 + $0xa0] sm:$0xff]
    %v359 = vld [vmem:[#allocation10 + $0xa8] sm:$0xff]
    %v360 = vld [vmem:[#allocation10 + $0xb0] sm:$0xff]
    %v361 = vld [vmem:[#allocation10 + $0xb8] sm:$0xff]
    %v362 = vld [vmem:[#allocation10 + $0xc0] sm:$0xff]
    %v363 = vld [vmem:[#allocation10 + $0xc8] sm:$0xff]
    %v364 = vld [vmem:[#allocation10 + $0xd0] sm:$0xff]
    %v365 = vld [vmem:[#allocation10 + $0xd8] sm:$0xff]
    %v366 = vld [vmem:[#allocation10 + $0xe0] sm:$0xff]
    %v367 = vld [vmem:[#allocation10 + $0xe8] sm:$0xff]
    %v368 = vld [vmem:[#allocation10 + $0xf0] sm:$0xff]
    %v369 = vld [vmem:[#allocation10 + $0xf8] sm:$0xff]
    %v370 = vld [vmem:[#allocation10 + $0x100] sm:$0xff]
    %v371 = vld [vmem:[#allocation10 + $0x108] sm:$0xff]
    %v372 = vld [vmem:[#allocation10 + $0x110] sm:$0xff]
    %v373 = vld [vmem:[#allocation10 + $0x118] sm:$0xff]
    %v374 = vld [vmem:[#allocation10 + $0x120] sm:$0xff]
    %v375 = vld [vmem:[#allocation10 + $0x128] sm:$0xff]
    %v376 = vld [vmem:[#allocation10 + $0x130] sm:$0xff]
    %v377 = vld [vmem:[#allocation10 + $0x138] sm:$0xff]
    %v378 = vld [vmem:[#allocation10 + $0x140] sm:$0xff]
    %v379 = vld [vmem:[#allocation10 + $0x148] sm:$0xff]
    %v380 = vld [vmem:[#allocation10 + $0x150] sm:$0xff]
    %v381 = vld [vmem:[#allocation10 + $0x158] sm:$0xff]
    %v382 = vld [vmem:[#allocation10 + $0x160] sm:$0xff]
    %v383 = vld [vmem:[#allocation10 + $0x168] sm:$0xff]
    %v384 = vld [vmem:[#allocation10 + $0x170] sm:$0xff]
    %v385 = vld [vmem:[#allocation10 + $0x178] sm:$0xff]
    %v386 = vld [vmem:[#allocation10 + $0x180] sm:$0xff]
    %v387 = vld [vmem:[#allocation10 + $0x188] sm:$0xff]
    %v388 = vld [vmem:[#allocation10 + $0x190] sm:$0xff]
    %v389 = vld [vmem:[#allocation10 + $0x198] sm:$0xff]
    %v390 = vld [vmem:[#allocation10 + $0x1a0] sm:$0xff]
    %v391 = vld [vmem:[#allocation10 + $0x1a8] sm:$0xff]
    %v392 = vld [vmem:[#allocation10 + $0x1b0] sm:$0xff]
    %v393 = vld [vmem:[#allocation10 + $0x1b8] sm:$0xff]
    %v394 = vld [vmem:[#allocation10 + $0x1c0] sm:$0xff]
    %v395 = vld [vmem:[#allocation10 + $0x1c8] sm:$0xff]
    %v396 = vld [vmem:[#allocation10 + $0x1d0] sm:$0xff]
    %v397 = vld [vmem:[#allocation10 + $0x1d8] sm:$0xff]
    %v398 = vld [vmem:[#allocation10 + $0x1e0] sm:$0xff]
    %v399 = vld [vmem:[#allocation10 + $0x1e8] sm:$0xff]
    %v400 = vld [vmem:[#allocation10 + $0x1f0] sm:$0xff]
    %v401 = vld [vmem:[#allocation10 + $0x1f8] sm:$0xff]
    %v402 = vld [vmem:[#allocation2] sm:$0xff]
    %v403 = vld [vmem:[#allocation3] sm:$0xff]
    %v404 = vld [vmem:[#allocation4] sm:$0xff]
    %v405 = vld [vmem:[#allocation4 + $0x8] sm:$0xff]
    %v406 = vld [vmem:[#allocation4 + $0x10] sm:$0xff]
    %v407 = vld [vmem:[#allocation4 + $0x18] sm:$0xff]
    %408 = vmatprep.subr.mxu0 %v339
    %409 = vmatpush1.msra.mxu0 %v338
    %410 = vmatprep.subr.mxu0 %v343
    %411 = vmatpush1.msra.mxu0 %v342
    %412 = vmatprep.subr.mxu0 %v347
    %413 = vmatpush1.msra.mxu0 %v346
    %414 = vmatprep.subr.mxu0 %v351
    %415 = vmatpush1.msra.mxu0 %v350
    %416 = vmatprep.subr.mxu0 %v355
    %417 = vmatpush1.msra.mxu0 %v354
    %418 = vmatprep.subr.mxu0 %v359
    %419 = vmatpush1.msra.mxu0 %v358
    %420 = vmatprep.subr.mxu0 %v363
    %421 = vmatpush1.msra.mxu0 %v362
    %422 = vmatprep.subr.mxu0 %v367
    %423 = vmatpush1.msra.mxu0 %v366
    %424 = vmatprep.subr.mxu0 %v371
    %425 = vmatpush1.msra.mxu0 %v370
    %426 = vmatprep.subr.mxu0 %v375
    %427 = vmatpush1.msra.mxu0 %v374
    %428 = vmatprep.subr.mxu0 %v379
    %429 = vmatpush1.msra.mxu0 %v378
    %430 = vmatprep.subr.mxu0 %v383
    %431 = vmatpush1.msra.mxu0 %v382
    %432 = vmatprep.subr.mxu0 %v387
    %433 = vmatpush1.msra.mxu0 %v386
    %434 = vmatprep.subr.mxu0 %v391
    %435 = vmatpush1.msra.mxu0 %v390
    %436 = vmatprep.subr.mxu0 %v395
    %437 = vmatpush1.msra.mxu0 %v394
    %438 = vmatprep.subr.mxu0 %v399
    %439 = vmatpush1.msra.mxu0 %v398
    %440 = vmatprep.subr.mxu0 0.0
    %441 = vmatpush1.msra.mxu0 0.0
    %442 = vmatprep.subr.mxu0 0.0
    %443 = vmatpush1.msra.mxu0 0.0
    %444 = vmatprep.subr.mxu0 0.0
    %445 = vmatpush1.msra.mxu0 0.0
    %446 = vmatprep.subr.mxu0 0.0
    %447 = vmatpush1.msra.mxu0 0.0
    %448 = vmatprep.subr.mxu0 0.0
    %449 = vmatpush1.msra.mxu0 0.0
    %450 = vmatprep.subr.mxu0 0.0
    %451 = vmatpush1.msra.mxu0 0.0
    %452 = vmatprep.subr.mxu0 0.0
    %453 = vmatpush1.msra.mxu0 0.0
    %454 = vmatprep.subr.mxu0 0.0
    %455 = vmatpush1.msra.mxu0 0.0
    %456 = vmatprep.subr.mxu0 0.0
    %457 = vmatpush1.msra.mxu0 0.0
    %458 = vmatprep.subr.mxu0 0.0
    %459 = vmatpush1.msra.mxu0 0.0
    %460 = vmatprep.subr.mxu0 0.0
    %461 = vmatpush1.msra.mxu0 0.0
    %462 = vmatprep.subr.mxu0 0.0
    %463 = vmatpush1.msra.mxu0 0.0
    %464 = vmatprep.subr.mxu0 0.0
    %465 = vmatpush1.msra.mxu0 0.0
    %466 = vmatprep.subr.mxu0 0.0
    %467 = vmatpush1.msra.mxu0 0.0
    %468 = vmatprep.subr.mxu0 0.0
    %469 = vmatpush1.msra.mxu0 0.0
    %470 = vmatprep.subr.mxu0 0.0
    %471 = vmatpush1.msra.mxu0 0.0
    %472 = vmatprep.mubr.f32.mxu0 0.0
    %473 = vmatmul.mubr.f32.gmra.mrb[0].mxu0 %v402
    %v474 = vpop.f32.mrb[0].mxu0
    %v475 = vadd.f32 0.0, %v474
    %v476 = vpop.f32.mrb[0].mxu0
    %v477 = vadd.f32 0.0, %v476
    %478 = vdwg.mxu0
    %479 = vmatprep.subr.mxu0 %v341
    %480 = vmatpush1.msra.mxu0 %v340
    %481 = vmatprep.subr.mxu0 %v345
    %482 = vmatpush1.msra.mxu0 %v344
    %483 = vmatprep.subr.mxu0 %v349
    %484 = vmatpush1.msra.mxu0 %v348
    %485 = vmatprep.subr.mxu0 %v353
    %486 = vmatpush1.msra.mxu0 %v352
    %487 = vmatprep.subr.mxu0 %v357
    %488 = vmatpush1.msra.mxu0 %v356
    %489 = vmatprep.subr.mxu0 %v361
    %490 = vmatpush1.msra.mxu0 %v360
    %491 = vmatprep.subr.mxu0 %v365
    %492 = vmatpush1.msra.mxu0 %v364
    %493 = vmatprep.subr.mxu0 %v369
    %494 = vmatpush1.msra.mxu0 %v368
    %495 = vmatprep.subr.mxu0 %v373
    %496 = vmatpush1.msra.mxu0 %v372
    %497 = vmatprep.subr.mxu0 %v377
    %498 = vmatpush1.msra.mxu0 %v376
    %499 = vmatprep.subr.mxu0 %v381
    %500 = vmatpush1.msra.mxu0 %v380
    %501 = vmatprep.subr.mxu0 %v385
    %502 = vmatpush1.msra.mxu0 %v384
    %503 = vmatprep.subr.mxu0 %v389
    %504 = vmatpush1.msra.mxu0 %v388
    %505 = vmatprep.subr.mxu0 %v393
    %506 = vmatpush1.msra.mxu0 %v392
    %507 = vmatprep.subr.mxu0 %v397
    %508 = vmatpush1.msra.mxu0 %v396
    %509 = vmatprep.subr.mxu0 %v401
    %510 = vmatpush1.msra.mxu0 %v400
    %511 = vmatprep.subr.mxu0 0.0
    %512 = vmatpush1.msra.mxu0 0.0
    %513 = vmatprep.subr.mxu0 0.0
    %514 = vmatpush1.msra.mxu0 0.0
    %515 = vmatprep.subr.mxu0 0.0
    %516 = vmatpush1.msra.mxu0 0.0
    %517 = vmatprep.subr.mxu0 0.0
    %518 = vmatpush1.msra.mxu0 0.0
    %519 = vmatprep.subr.mxu0 0.0
    %520 = vmatpush1.msra.mxu0 0.0
    %521 = vmatprep.subr.mxu0 0.0
    %522 = vmatpush1.msra.mxu0 0.0
    %523 = vmatprep.subr.mxu0 0.0
    %524 = vmatpush1.msra.mxu0 0.0
    %525 = vmatprep.subr.mxu0 0.0
    %526 = vmatpush1.msra.mxu0 0.0
    %527 = vmatprep.subr.mxu0 0.0
    %528 = vmatpush1.msra.mxu0 0.0
    %529 = vmatprep.subr.mxu0 0.0
    %530 = vmatpush1.msra.mxu0 0.0
    %531 = vmatprep.subr.mxu0 0.0
    %532 = vmatpush1.msra.mxu0 0.0
    %533 = vmatprep.subr.mxu0 0.0
    %534 = vmatpush1.msra.mxu0 0.0
    %535 = vmatprep.subr.mxu0 0.0
    %536 = vmatpush1.msra.mxu0 0.0
    %537 = vmatprep.subr.mxu0 0.0
    %538 = vmatpush1.msra.mxu0 0.0
    %539 = vmatprep.subr.mxu0 0.0
    %540 = vmatpush1.msra.mxu0 0.0
    %541 = vmatprep.subr.mxu0 0.0
    %542 = vmatpush1.msra.mxu0 0.0
    %543 = vmatprep.mubr.f32.mxu0 0.0
    %544 = vmatmul.mubr.f32.gmra.mrb[0].mxu0 %v402
    %v545 = vpop.f32.mrb[0].mxu0
    %v546 = vadd.f32 0.0, %v545
    %v547 = vpop.f32.mrb[0].mxu0
    %v548 = vadd.f32 0.0, %v547
    %549 = vdwg.mxu0
    %v550 = vadd.f32 %v404, %v475
    %v551 = vadd.f32 %v405, %v477
    %v552 = vadd.f32 %v406, %v546
    %v553 = vadd.f32 %v407, %v548
    %v554 = vxor.u32 %v550, 2147483648
    %v555 = vxor.u32 %v551, 2147483648
    %v556 = vxor.u32 %v552, 2147483648
    %v557 = vmul.f32 %v554, 1.442695
    %v558 = vpow.pop %v557
    %v559 = vmul.f32 %v555, 1.442695
    %v560 = vpow.pop %v559
    %v561 = vmul.f32 %v556, 1.442695
    %v562 = vpow.pop %v561
    %v563 = vadd.f32 %v558, 1.0
    %v564 = vadd.f32 %v560, 1.0
    %v565 = vadd.f32 %v562, 1.0
    %v566 = vrcp.pop %v563
    %v567 = vmul.f32 1.0, %v566
    %v568 = vrcp.pop %v564
    %v569 = vmul.f32 1.0, %v568
    %v570 = vrcp.pop %v565
    %v571 = vmul.f32 1.0, %v570
    %v572 = vtanh.pop %v553
    %v573 = vmul.f32 %v569, %v403
    %v574 = vmul.f32 %v567, %v572
    %v575 = vadd.f32 %v573, %v574
    %v576 = vtanh.pop %v575
    %v577 = vmul.f32 %v571, %v576
    %s578 = scalar_lea.vmem [#allocation4], 32
    %v579 = vld [vmem:[%s578] sm:$0xff]
    %v580 = vld [vmem:[%s578 + $0x8] sm:$0xff]
    %v581 = vld [vmem:[%s578 + $0x10] sm:$0xff]
    %v582 = vld [vmem:[%s578 + $0x18] sm:$0xff]
    %583 = vmatprep.subr.mxu0 %v339
    %584 = vmatpush1.msra.mxu0 %v338
    %585 = vmatprep.subr.mxu0 %v343
    %586 = vmatpush1.msra.mxu0 %v342
    %587 = vmatprep.subr.mxu0 %v347
    %588 = vmatpush1.msra.mxu0 %v346
    %589 = vmatprep.subr.mxu0 %v351
    %590 = vmatpush1.msra.mxu0 %v350
    %591 = vmatprep.subr.mxu0 %v355
    %592 = vmatpush1.msra.mxu0 %v354
    %593 = vmatprep.subr.mxu0 %v359
    %594 = vmatpush1.msra.mxu0 %v358
    %595 = vmatprep.subr.mxu0 %v363
    %596 = vmatpush1.msra.mxu0 %v362
    %597 = vmatprep.subr.mxu0 %v367
    %598 = vmatpush1.msra.mxu0 %v366
    %599 = vmatprep.subr.mxu0 %v371
    %600 = vmatpush1.msra.mxu0 %v370
    %601 = vmatprep.subr.mxu0 %v375
    %602 = vmatpush1.msra.mxu0 %v374
    %603 = vmatprep.subr.mxu0 %v379
    %604 = vmatpush1.msra.mxu0 %v378
    %605 = vmatprep.subr.mxu0 %v383
    %606 = vmatpush1.msra.mxu0 %v382
    %607 = vmatprep.subr.mxu0 %v387
    %608 = vmatpush1.msra.mxu0 %v386
    %609 = vmatprep.subr.mxu0 %v391
    %610 = vmatpush1.msra.mxu0 %v390
    %611 = vmatprep.subr.mxu0 %v395
    %612 = vmatpush1.msra.mxu0 %v394
    %613 = vmatprep.subr.mxu0 %v399
    %614 = vmatpush1.msra.mxu0 %v398
    %615 = vmatprep.subr.mxu0 0.0
    %616 = vmatpush1.msra.mxu0 0.0
    %617 = vmatprep.subr.mxu0 0.0
    %618 = vmatpush1.msra.mxu0 0.0
    %619 = vmatprep.subr.mxu0 0.0
    %620 = vmatpush1.msra.mxu0 0.0
    %621 = vmatprep.subr.mxu0 0.0
    %622 = vmatpush1.msra.mxu0 0.0
    %623 = vmatprep.subr.mxu0 0.0
    %624 = vmatpush1.msra.mxu0 0.0
    %625 = vmatprep.subr.mxu0 0.0
    %626 = vmatpush1.msra.mxu0 0.0
    %627 = vmatprep.subr.mxu0 0.0
    %628 = vmatpush1.msra.mxu0 0.0
    %629 = vmatprep.subr.mxu0 0.0
    %630 = vmatpush1.msra.mxu0 0.0
    %631 = vmatprep.subr.mxu0 0.0
    %632 = vmatpush1.msra.mxu0 0.0
    %633 = vmatprep.subr.mxu0 0.0
    %634 = vmatpush1.msra.mxu0 0.0
    %635 = vmatprep.subr.mxu0 0.0
    %636 = vmatpush1.msra.mxu0 0.0
    %637 = vmatprep.subr.mxu0 0.0
    %638 = vmatpush1.msra.mxu0 0.0
    %639 = vmatprep.subr.mxu0 0.0
    %640 = vmatpush1.msra.mxu0 0.0
    %641 = vmatprep.subr.mxu0 0.0
    %642 = vmatpush1.msra.mxu0 0.0
    %643 = vmatprep.subr.mxu0 0.0
    %644 = vmatpush1.msra.mxu0 0.0
    %645 = vmatprep.subr.mxu0 0.0
    %646 = vmatpush1.msra.mxu0 0.0
    %647 = vmatprep.mubr.f32.mxu0 0.0
    %648 = vmatmul.mubr.f32.gmra.mrb[0].mxu0 %v577
    %v649 = vpop.f32.mrb[0].mxu0
    %v650 = vadd.f32 0.0, %v649
    %v651 = vpop.f32.mrb[0].mxu0
    %v652 = vadd.f32 0.0, %v651
    %653 = vdwg.mxu0
    %654 = vmatprep.subr.mxu0 %v341
    %655 = vmatpush1.msra.mxu0 %v340
    %656 = vmatprep.subr.mxu0 %v345
    %657 = vmatpush1.msra.mxu0 %v344
    %658 = vmatprep.subr.mxu0 %v349
    %659 = vmatpush1.msra.mxu0 %v348
    %660 = vmatprep.subr.mxu0 %v353
    %661 = vmatpush1.msra.mxu0 %v352
    %662 = vmatprep.subr.mxu0 %v357
    %663 = vmatpush1.msra.mxu0 %v356
    %664 = vmatprep.subr.mxu0 %v361
    %665 = vmatpush1.msra.mxu0 %v360
    %666 = vmatprep.subr.mxu0 %v365
    %667 = vmatpush1.msra.mxu0 %v364
    %668 = vmatprep.subr.mxu0 %v369
    %669 = vmatpush1.msra.mxu0 %v368
    %670 = vmatprep.subr.mxu0 %v373
    %671 = vmatpush1.msra.mxu0 %v372
    %672 = vmatprep.subr.mxu0 %v377
    %673 = vmatpush1.msra.mxu0 %v376
    %674 = vmatprep.subr.mxu0 %v381
    %675 = vmatpush1.msra.mxu0 %v380
    %676 = vmatprep.subr.mxu0 %v385
    %677 = vmatpush1.msra.mxu0 %v384
    %678 = vmatprep.subr.mxu0 %v389
    %679 = vmatpush1.msra.mxu0 %v388
    %680 = vmatprep.subr.mxu0 %v393
    %681 = vmatpush1.msra.mxu0 %v392
    %682 = vmatprep.subr.mxu0 %v397
    %683 = vmatpush1.msra.mxu0 %v396
    %684 = vmatprep.subr.mxu0 %v401
    %685 = vmatpush1.msra.mxu0 %v400
    %686 = vmatprep.subr.mxu0 0.0
    %687 = vmatpush1.msra.mxu0 0.0
    %688 = vmatprep.subr.mxu0 0.0
    %689 = vmatpush1.msra.mxu0 0.0
    %690 = vmatprep.subr.mxu0 0.0
    %691 = vmatpush1.msra.mxu0 0.0
    %692 = vmatprep.subr.mxu0 0.0
    %693 = vmatpush1.msra.mxu0 0.0
    %694 = vmatprep.subr.mxu0 0.0
    %695 = vmatpush1.msra.mxu0 0.0
    %696 = vmatprep.subr.mxu0 0.0
    %697 = vmatpush1.msra.mxu0 0.0
    %698 = vmatprep.subr.mxu0 0.0
    %699 = vmatpush1.msra.mxu0 0.0
    %700 = vmatprep.subr.mxu0 0.0
    %701 = vmatpush1.msra.mxu0 0.0
    %702 = vmatprep.subr.mxu0 0.0
    %703 = vmatpush1.msra.mxu0 0.0
    %704 = vmatprep.subr.mxu0 0.0
    %705 = vmatpush1.msra.mxu0 0.0
    %706 = vmatprep.subr.mxu0 0.0
    %707 = vmatpush1.msra.mxu0 0.0
    %708 = vmatprep.subr.mxu0 0.0
    %709 = vmatpush1.msra.mxu0 0.0
    %710 = vmatprep.subr.mxu0 0.0
    %711 = vmatpush1.msra.mxu0 0.0
    %712 = vmatprep.subr.mxu0 0.0
    %713 = vmatpush1.msra.mxu0 0.0
    %714 = vmatprep.subr.mxu0 0.0
    %715 = vmatpush1.msra.mxu0 0.0
    %716 = vmatprep.subr.mxu0 0.0
    %717 = vmatpush1.msra.mxu0 0.0
    %718 = vmatprep.mubr.f32.mxu0 0.0
    %719 = vmatmul.mubr.f32.gmra.mrb[0].mxu0 %v577
    %v720 = vpop.f32.mrb[0].mxu0
    %v721 = vadd.f32 0.0, %v720
    %v722 = vpop.f32.mrb[0].mxu0
    %v723 = vadd.f32 0.0, %v722
    %724 = vdwg.mxu0
    %v725 = vadd.f32 %v579, %v650
    %v726 = vadd.f32 %v580, %v652
    %v727 = vadd.f32 %v581, %v721
    %v728 = vadd.f32 %v582, %v723
    %v729 = vxor.u32 %v725, 2147483648
    %v730 = vxor.u32 %v726, 2147483648
    %v731 = vxor.u32 %v727, 2147483648
    %v732 = vmul.f32 %v729, 1.442695
    %v733 = vpow.pop %v732
    %v734 = vmul.f32 %v730, 1.442695
    %v735 = vpow.pop %v734
    %v736 = vmul.f32 %v731, 1.442695
    %v737 = vpow.pop %v736
    %v738 = vadd.f32 %v733, 1.0
    %v739 = vadd.f32 %v735, 1.0
    %v740 = vadd.f32 %v737, 1.0
    %v741 = vrcp.pop %v738
    %v742 = vmul.f32 1.0, %v741
    %v743 = vrcp.pop %v739
    %v744 = vmul.f32 1.0, %v743
    %v745 = vrcp.pop %v740
    %v746 = vmul.f32 1.0, %v745
    %v747 = vtanh.pop %v728
    %v748 = vmul.f32 %v744, %v575
    %v749 = vmul.f32 %v742, %v747
    %v750 = vadd.f32 %v748, %v749
    %v751 = vtanh.pop %v750
    %v752 = vmul.f32 %v746, %v751
    %s753 = scalar_lea.vmem [#allocation4], 64
    %v754 = vld [vmem:[%s753] sm:$0xff]
    %v755 = vld [vmem:[%s753 + $0x8] sm:$0xff]
    %v756 = vld [vmem:[%s753 + $0x10] sm:$0xff]
    %v757 = vld [vmem:[%s753 + $0x18] sm:$0xff]
    %758 = vmatprep.subr.mxu0 %v339
    %759 = vmatpush1.msra.mxu0 %v338
    %760 = vmatprep.subr.mxu0 %v343
    %761 = vmatpush1.msra.mxu0 %v342
    %762 = vmatprep.subr.mxu0 %v347
    %763 = vmatpush1.msra.mxu0 %v346
    %764 = vmatprep.subr.mxu0 %v351
    %765 = vmatpush1.msra.mxu0 %v350
    %766 = vmatprep.subr.mxu0 %v355
    %767 = vmatpush1.msra.mxu0 %v354
    %768 = vmatprep.subr.mxu0 %v359
    %769 = vmatpush1.msra.mxu0 %v358
    %770 = vmatprep.subr.mxu0 %v363
    %771 = vmatpush1.msra.mxu0 %v362
    %772 = vmatprep.subr.mxu0 %v367
    %773 = vmatpush1.msra.mxu0 %v366
    %774 = vmatprep.subr.mxu0 %v371
    %775 = vmatpush1.msra.mxu0 %v370
    %776 = vmatprep.subr.mxu0 %v375
    %777 = vmatpush1.msra.mxu0 %v374
    %778 = vmatprep.subr.mxu0 %v379
    %779 = vmatpush1.msra.mxu0 %v378
    %780 = vmatprep.subr.mxu0 %v383
    %781 = vmatpush1.msra.mxu0 %v382
    %782 = vmatprep.subr.mxu0 %v387
    %783 = vmatpush1.msra.mxu0 %v386
    %784 = vmatprep.subr.mxu0 %v391
    %785 = vmatpush1.msra.mxu0 %v390
    %786 = vmatprep.subr.mxu0 %v395
    %787 = vmatpush1.msra.mxu0 %v394
    %788 = vmatprep.subr.mxu0 %v399
    %789 = vmatpush1.msra.mxu0 %v398
    %790 = vmatprep.subr.mxu0 0.0
    %791 = vmatpush1.msra.mxu0 0.0
    %792 = vmatprep.subr.mxu0 0.0
    %793 = vmatpush1.msra.mxu0 0.0
    %794 = vmatprep.subr.mxu0 0.0
    %795 = vmatpush1.msra.mxu0 0.0
    %796 = vmatprep.subr.mxu0 0.0
    %797 = vmatpush1.msra.mxu0 0.0
    %798 = vmatprep.subr.mxu0 0.0
    %799 = vmatpush1.msra.mxu0 0.0
    %800 = vmatprep.subr.mxu0 0.0
    %801 = vmatpush1.msra.mxu0 0.0
    %802 = vmatprep.subr.mxu0 0.0
    %803 = vmatpush1.msra.mxu0 0.0
    %804 = vmatprep.subr.mxu0 0.0
    %805 = vmatpush1.msra.mxu0 0.0
    %806 = vmatprep.subr.mxu0 0.0
    %807 = vmatpush1.msra.mxu0 0.0
    %808 = vmatprep.subr.mxu0 0.0
    %809 = vmatpush1.msra.mxu0 0.0
    %810 = vmatprep.subr.mxu0 0.0
    %811 = vmatpush1.msra.mxu0 0.0
    %812 = vmatprep.subr.mxu0 0.0
    %813 = vmatpush1.msra.mxu0 0.0
    %814 = vmatprep.subr.mxu0 0.0
    %815 = vmatpush1.msra.mxu0 0.0
    %816 = vmatprep.subr.mxu0 0.0
    %817 = vmatpush1.msra.mxu0 0.0
    %818 = vmatprep.subr.mxu0 0.0
    %819 = vmatpush1.msra.mxu0 0.0
    %820 = vmatprep.subr.mxu0 0.0
    %821 = vmatpush1.msra.mxu0 0.0
    %822 = vmatprep.mubr.f32.mxu0 0.0
    %823 = vmatmul.mubr.f32.gmra.mrb[0].mxu0 %v752
    %v824 = vpop.f32.mrb[0].mxu0
    %v825 = vadd.f32 0.0, %v824
    %v826 = vpop.f32.mrb[0].mxu0
    %v827 = vadd.f32 0.0, %v826
    %828 = vdwg.mxu0
    %829 = vmatprep.subr.mxu0 %v341
    %830 = vmatpush1.msra.mxu0 %v340
    %831 = vmatprep.subr.mxu0 %v345
    %832 = vmatpush1.msra.mxu0 %v344
    %833 = vmatprep.subr.mxu0 %v349
    %834 = vmatpush1.msra.mxu0 %v348
    %835 = vmatprep.subr.mxu0 %v353
    %836 = vmatpush1.msra.mxu0 %v352
    %837 = vmatprep.subr.mxu0 %v357
    %838 = vmatpush1.msra.mxu0 %v356
    %839 = vmatprep.subr.mxu0 %v361
    %840 = vmatpush1.msra.mxu0 %v360
    %841 = vmatprep.subr.mxu0 %v365
    %842 = vmatpush1.msra.mxu0 %v364
    %843 = vmatprep.subr.mxu0 %v369
    %844 = vmatpush1.msra.mxu0 %v368
    %845 = vmatprep.subr.mxu0 %v373
    %846 = vmatpush1.msra.mxu0 %v372
    %847 = vmatprep.subr.mxu0 %v377
    %848 = vmatpush1.msra.mxu0 %v376
    %849 = vmatprep.subr.mxu0 %v381
    %850 = vmatpush1.msra.mxu0 %v380
    %851 = vmatprep.subr.mxu0 %v385
    %852 = vmatpush1.msra.mxu0 %v384
    %853 = vmatprep.subr.mxu0 %v389
    %854 = vmatpush1.msra.mxu0 %v388
    %855 = vmatprep.subr.mxu0 %v393
    %856 = vmatpush1.msra.mxu0 %v392
    %857 = vmatprep.subr.mxu0 %v397
    %858 = vmatpush1.msra.mxu0 %v396
    %859 = vmatprep.subr.mxu0 %v401
    %860 = vmatpush1.msra.mxu0 %v400
    %861 = vmatprep.subr.mxu0 0.0
    %862 = vmatpush1.msra.mxu0 0.0
    %863 = vmatprep.subr.mxu0 0.0
    %864 = vmatpush1.msra.mxu0 0.0
    %865 = vmatprep.subr.mxu0 0.0
    %866 = vmatpush1.msra.mxu0 0.0
    %867 = vmatprep.subr.mxu0 0.0
    %868 = vmatpush1.msra.mxu0 0.0
    %869 = vmatprep.subr.mxu0 0.0
    %870 = vmatpush1.msra.mxu0 0.0
    %871 = vmatprep.subr.mxu0 0.0
    %872 = vmatpush1.msra.mxu0 0.0
    %873 = vmatprep.subr.mxu0 0.0
    %874 = vmatpush1.msra.mxu0 0.0
    %875 = vmatprep.subr.mxu0 0.0
    %876 = vmatpush1.msra.mxu0 0.0
    %877 = vmatprep.subr.mxu0 0.0
    %878 = vmatpush1.msra.mxu0 0.0
    %879 = vmatprep.subr.mxu0 0.0
    %880 = vmatpush1.msra.mxu0 0.0
    %881 = vmatprep.subr.mxu0 0.0
    %882 = vmatpush1.msra.mxu0 0.0
    %883 = vmatprep.subr.mxu0 0.0
    %884 = vmatpush1.msra.mxu0 0.0
    %885 = vmatprep.subr.mxu0 0.0
    %886 = vmatpush1.msra.mxu0 0.0
    %887 = vmatprep.subr.mxu0 0.0
    %888 = vmatpush1.msra.mxu0 0.0
    %889 = vmatprep.subr.mxu0 0.0
    %890 = vmatpush1.msra.mxu0 0.0
    %891 = vmatprep.subr.mxu0 0.0
    %892 = vmatpush1.msra.mxu0 0.0
    %893 = vmatprep.mubr.f32.mxu0 0.0
    %894 = vmatmul.mubr.f32.gmra.mrb[0].mxu0 %v752
    %v895 = vpop.f32.mrb[0].mxu0
    %v896 = vadd.f32 0.0, %v895
    %v897 = vpop.f32.mrb[0].mxu0
    %v898 = vadd.f32 0.0, %v897
    %899 = vdwg.mxu0
    %v900 = vadd.f32 %v754, %v825
    %v901 = vadd.f32 %v755, %v827
    %v902 = vadd.f32 %v756, %v896
    %v903 = vadd.f32 %v757, %v898
    %v904 = vxor.u32 %v900, 2147483648
    %v905 = vxor.u32 %v901, 2147483648
    %v906 = vxor.u32 %v902, 2147483648
    %v907 = vmul.f32 %v904, 1.442695
    %v908 = vpow.pop %v907
    %v909 = vmul.f32 %v905, 1.442695
    %v910 = vpow.pop %v909
    %v911 = vmul.f32 %v906, 1.442695
    %v912 = vpow.pop %v911
    %v913 = vadd.f32 %v908, 1.0
    %v914 = vadd.f32 %v910, 1.0
    %v915 = vadd.f32 %v912, 1.0
    %v916 = vrcp.pop %v913
    %v917 = vmul.f32 1.0, %v916
    %v918 = vrcp.pop %v914
    %v919 = vmul.f32 1.0, %v918
    %v920 = vrcp.pop %v915
    %v921 = vmul.f32 1.0, %v920
    %v922 = vtanh.pop %v903
    %v923 = vmul.f32 %v919, %v750
    %v924 = vmul.f32 %v917, %v922
    %v925 = vadd.f32 %v923, %v924
    %v926 = vtanh.pop %v925
    %v927 = vmul.f32 %v921, %v926
    %s928 = scalar_lea.vmem [#allocation4], 96
    %v929 = vld [vmem:[%s928] sm:$0xff]
    %v930 = vld [vmem:[%s928 + $0x8] sm:$0xff]
    %v931 = vld [vmem:[%s928 + $0x10] sm:$0xff]
    %v932 = vld [vmem:[%s928 + $0x18] sm:$0xff]
    %933 = vmatprep.subr.mxu0 %v339
    %934 = vmatpush1.msra.mxu0 %v338
    %935 = vmatprep.subr.mxu0 %v343
    %936 = vmatpush1.msra.mxu0 %v342
    %937 = vmatprep.subr.mxu0 %v347
    %938 = vmatpush1.msra.mxu0 %v346
    %939 = vmatprep.subr.mxu0 %v351
    %940 = vmatpush1.msra.mxu0 %v350
    %941 = vmatprep.subr.mxu0 %v355
    %942 = vmatpush1.msra.mxu0 %v354
    %943 = vmatprep.subr.mxu0 %v359
    %944 = vmatpush1.msra.mxu0 %v358
    %945 = vmatprep.subr.mxu0 %v363
    %946 = vmatpush1.msra.mxu0 %v362
    %947 = vmatprep.subr.mxu0 %v367
    %948 = vmatpush1.msra.mxu0 %v366
    %949 = vmatprep.subr.mxu0 %v371
    %950 = vmatpush1.msra.mxu0 %v370
    %951 = vmatprep.subr.mxu0 %v375
    %952 = vmatpush1.msra.mxu0 %v374
    %953 = vmatprep.subr.mxu0 %v379
    %954 = vmatpush1.msra.mxu0 %v378
    %955 = vmatprep.subr.mxu0 %v383
    %956 = vmatpush1.msra.mxu0 %v382
    %957 = vmatprep.subr.mxu0 %v387
    %958 = vmatpush1.msra.mxu0 %v386
    %959 = vmatprep.subr.mxu0 %v391
    %960 = vmatpush1.msra.mxu0 %v390
    %961 = vmatprep.subr.mxu0 %v395
    %962 = vmatpush1.msra.mxu0 %v394
    %963 = vmatprep.subr.mxu0 %v399
    %964 = vmatpush1.msra.mxu0 %v398
    %965 = vmatprep.subr.mxu0 0.0
    %966 = vmatpush1.msra.mxu0 0.0
    %967 = vmatprep.subr.mxu0 0.0
    %968 = vmatpush1.msra.mxu0 0.0
    %969 = vmatprep.subr.mxu0 0.0
    %970 = vmatpush1.msra.mxu0 0.0
    %971 = vmatprep.subr.mxu0 0.0
    %972 = vmatpush1.msra.mxu0 0.0
    %973 = vmatprep.subr.mxu0 0.0
    %974 = vmatpush1.msra.mxu0 0.0
    %975 = vmatprep.subr.mxu0 0.0
    %976 = vmatpush1.msra.mxu0 0.0
    %977 = vmatprep.subr.mxu0 0.0
    %978 = vmatpush1.msra.mxu0 0.0
    %979 = vmatprep.subr.mxu0 0.0
    %980 = vmatpush1.msra.mxu0 0.0
    %981 = vmatprep.subr.mxu0 0.0
    %982 = vmatpush1.msra.mxu0 0.0
    %983 = vmatprep.subr.mxu0 0.0
    %984 = vmatpush1.msra.mxu0 0.0
    %985 = vmatprep.subr.mxu0 0.0
    %986 = vmatpush1.msra.mxu0 0.0
    %987 = vmatprep.subr.mxu0 0.0
    %988 = vmatpush1.msra.mxu0 0.0
    %989 = vmatprep.subr.mxu0 0.0
    %990 = vmatpush1.msra.mxu0 0.0
    %991 = vmatprep.subr.mxu0 0.0
    %992 = vmatpush1.msra.mxu0 0.0
    %993 = vmatprep.subr.mxu0 0.0
    %994 = vmatpush1.msra.mxu0 0.0
    %995 = vmatprep.subr.mxu0 0.0
    %996 = vmatpush1.msra.mxu0 0.0
    %997 = vmatprep.mubr.f32.mxu0 0.0
    %998 = vmatmul.mubr.f32.gmra.mrb[0].mxu0 %v927
    %v999 = vpop.f32.mrb[0].mxu0
    %v1000 = vadd.f32 0.0, %v999
    %v1001 = vpop.f32.mrb[0].mxu0
    %v1002 = vadd.f32 0.0, %v1001
    %1003 = vdwg.mxu0
    %1004 = vmatprep.subr.mxu0 %v341
    %1005 = vmatpush1.msra.mxu0 %v340
    %1006 = vmatprep.subr.mxu0 %v345
    %1007 = vmatpush1.msra.mxu0 %v344
    %1008 = vmatprep.subr.mxu0 %v349
    %1009 = vmatpush1.msra.mxu0 %v348
    %1010 = vmatprep.subr.mxu0 %v353
    %1011 = vmatpush1.msra.mxu0 %v352
    %1012 = vmatprep.subr.mxu0 %v357
    %1013 = vmatpush1.msra.mxu0 %v356
    %1014 = vmatprep.subr.mxu0 %v361
    %1015 = vmatpush1.msra.mxu0 %v360
    %1016 = vmatprep.subr.mxu0 %v365
    %1017 = vmatpush1.msra.mxu0 %v364
    %1018 = vmatprep.subr.mxu0 %v369
    %1019 = vmatpush1.msra.mxu0 %v368
    %1020 = vmatprep.subr.mxu0 %v373
    %1021 = vmatpush1.msra.mxu0 %v372
    %1022 = vmatprep.subr.mxu0 %v377
    %1023 = vmatpush1.msra.mxu0 %v376
    %1024 = vmatprep.subr.mxu0 %v381
    %1025 = vmatpush1.msra.mxu0 %v380
    %1026 = vmatprep.subr.mxu0 %v385
    %1027 = vmatpush1.msra.mxu0 %v384
    %1028 = vmatprep.subr.mxu0 %v389
    %1029 = vmatpush1.msra.mxu0 %v388
    %1030 = vmatprep.subr.mxu0 %v393
    %1031 = vmatpush1.msra.mxu0 %v392
    %1032 = vmatprep.subr.mxu0 %v397
    %1033 = vmatpush1.msra.mxu0 %v396
    %1034 = vmatprep.subr.mxu0 %v401
    %1035 = vmatpush1.msra.mxu0 %v400
    %1036 = vmatprep.subr.mxu0 0.0
    %1037 = vmatpush1.msra.mxu0 0.0
    %1038 = vmatprep.subr.mxu0 0.0
    %1039 = vmatpush1.msra.mxu0 0.0
    %1040 = vmatprep.subr.mxu0 0.0
    %1041 = vmatpush1.msra.mxu0 0.0
    %1042 = vmatprep.subr.mxu0 0.0
    %1043 = vmatpush1.msra.mxu0 0.0
    %1044 = vmatprep.subr.mxu0 0.0
    %1045 = vmatpush1.msra.mxu0 0.0
    %1046 = vmatprep.subr.mxu0 0.0
    %1047 = vmatpush1.msra.mxu0 0.0
    %1048 = vmatprep.subr.mxu0 0.0
    %1049 = vmatpush1.msra.mxu0 0.0
    %1050 = vmatprep.subr.mxu0 0.0
    %1051 = vmatpush1.msra.mxu0 0.0
    %1052 = vmatprep.subr.mxu0 0.0
    %1053 = vmatpush1.msra.mxu0 0.0
    %1054 = vmatprep.subr.mxu0 0.0
    %1055 = vmatpush1.msra.mxu0 0.0
    %1056 = vmatprep.subr.mxu0 0.0
    %1057 = vmatpush1.msra.mxu0 0.0
    %1058 = vmatprep.subr.mxu0 0.0
    %1059 = vmatpush1.msra.mxu0 0.0
    %1060 = vmatprep.subr.mxu0 0.0
    %1061 = vmatpush1.msra.mxu0 0.0
    %1062 = vmatprep.subr.mxu0 0.0
    %1063 = vmatpush1.msra.mxu0 0.0
    %1064 = vmatprep.subr.mxu0 0.0
    %1065 = vmatpush1.msra.mxu0 0.0
    %1066 = vmatprep.subr.mxu0 0.0
    %1067 = vmatpush1.msra.mxu0 0.0
    %1068 = vmatprep.mubr.f32.mxu0 0.0
    %1069 = vmatmul.mubr.f32.gmra.mrb[0].mxu0 %v927
    %v1070 = vpop.f32.mrb[0].mxu0
    %v1071 = vadd.f32 0.0, %v1070
    %v1072 = vpop.f32.mrb[0].mxu0
    %v1073 = vadd.f32 0.0, %v1072
    %1074 = vdwg.mxu0
    %v1075 = vadd.f32 %v929, %v1000
    %v1076 = vadd.f32 %v930, %v1002
    %v1077 = vadd.f32 %v931, %v1071
    %v1078 = vadd.f32 %v932, %v1073
    %v1079 = vxor.u32 %v1075, 2147483648
    %v1080 = vxor.u32 %v1076, 2147483648
    %v1081 = vxor.u32 %v1077, 2147483648
    %v1082 = vmul.f32 %v1079, 1.442695
    %v1083 = vpow.pop %v1082
    %v1084 = vmul.f32 %v1080, 1.442695
    %v1085 = vpow.pop %v1084
    %v1086 = vmul.f32 %v1081, 1.442695
    %v1087 = vpow.pop %v1086
    %v1088 = vadd.f32 %v1083, 1.0
    %v1089 = vadd.f32 %v1085, 1.0
    %v1090 = vadd.f32 %v1087, 1.0
    %v1091 = vrcp.pop %v1088
    %v1092 = vmul.f32 1.0, %v1091
    %v1093 = vrcp.pop %v1089
    %v1094 = vmul.f32 1.0, %v1093
    %v1095 = vrcp.pop %v1090
    %v1096 = vmul.f32 1.0, %v1095
    %v1097 = vtanh.pop %v1078
    %v1098 = vmul.f32 %v1094, %v925
    %v1099 = vmul.f32 %v1092, %v1097
    %v1100 = vadd.f32 %v1098, %v1099
    %v1101 = vtanh.pop %v1100
    %v1102 = vmul.f32 %v1096, %v1101
    %s1103 = scalar_lea.vmem [#allocation4], 128
    %v1104 = vld [vmem:[%s1103] sm:$0xff]
    %v1105 = vld [vmem:[%s1103 + $0x8] sm:$0xff]
    %v1106 = vld [vmem:[%s1103 + $0x10] sm:$0xff]
    %v1107 = vld [vmem:[%s1103 + $0x18] sm:$0xff]
    %1108 = vmatprep.subr.mxu0 %v339
    %1109 = vmatpush1.msra.mxu0 %v338
    %1110 = vmatprep.subr.mxu0 %v343
    %1111 = vmatpush1.msra.mxu0 %v342
    %1112 = vmatprep.subr.mxu0 %v347
    %1113 = vmatpush1.msra.mxu0 %v346
    %1114 = vmatprep.subr.mxu0 %v351
    %1115 = vmatpush1.msra.mxu0 %v350
    %1116 = vmatprep.subr.mxu0 %v355
    %1117 = vmatpush1.msra.mxu0 %v354
    %1118 = vmatprep.subr.mxu0 %v359
    %1119 = vmatpush1.msra.mxu0 %v358
    %1120 = vmatprep.subr.mxu0 %v363
    %1121 = vmatpush1.msra.mxu0 %v362
    %1122 = vmatprep.subr.mxu0 %v367
    %1123 = vmatpush1.msra.mxu0 %v366
    %1124 = vmatprep.subr.mxu0 %v371
    %1125 = vmatpush1.msra.mxu0 %v370
    %1126 = vmatprep.subr.mxu0 %v375
    %1127 = vmatpush1.msra.mxu0 %v374
    %1128 = vmatprep.subr.mxu0 %v379
    %1129 = vmatpush1.msra.mxu0 %v378
    %1130 = vmatprep.subr.mxu0 %v383
    %1131 = vmatpush1.msra.mxu0 %v382
    %1132 = vmatprep.subr.mxu0 %v387
    %1133 = vmatpush1.msra.mxu0 %v386
    %1134 = vmatprep.subr.mxu0 %v391
    %1135 = vmatpush1.msra.mxu0 %v390
    %1136 = vmatprep.subr.mxu0 %v395
    %1137 = vmatpush1.msra.mxu0 %v394
    %1138 = vmatprep.subr.mxu0 %v399
    %1139 = vmatpush1.msra.mxu0 %v398
    %1140 = vmatprep.subr.mxu0 0.0
    %1141 = vmatpush1.msra.mxu0 0.0
    %1142 = vmatprep.subr.mxu0 0.0
    %1143 = vmatpush1.msra.mxu0 0.0
    %1144 = vmatprep.subr.mxu0 0.0
    %1145 = vmatpush1.msra.mxu0 0.0
    %1146 = vmatprep.subr.mxu0 0.0
    %1147 = vmatpush1.msra.mxu0 0.0
    %1148 = vmatprep.subr.mxu0 0.0
    %1149 = vmatpush1.msra.mxu0 0.0
    %1150 = vmatprep.subr.mxu0 0.0
    %1151 = vmatpush1.msra.mxu0 0.0
    %1152 = vmatprep.subr.mxu0 0.0
    %1153 = vmatpush1.msra.mxu0 0.0
    %1154 = vmatprep.subr.mxu0 0.0
    %1155 = vmatpush1.msra.mxu0 0.0
    %1156 = vmatprep.subr.mxu0 0.0
    %1157 = vmatpush1.msra.mxu0 0.0
    %1158 = vmatprep.subr.mxu0 0.0
    %1159 = vmatpush1.msra.mxu0 0.0
    %1160 = vmatprep.subr.mxu0 0.0
    %1161 = vmatpush1.msra.mxu0 0.0
    %1162 = vmatprep.subr.mxu0 0.0
    %1163 = vmatpush1.msra.mxu0 0.0
    %1164 = vmatprep.subr.mxu0 0.0
    %1165 = vmatpush1.msra.mxu0 0.0
    %1166 = vmatprep.subr.mxu0 0.0
    %1167 = vmatpush1.msra.mxu0 0.0
    %1168 = vmatprep.subr.mxu0 0.0
    %1169 = vmatpush1.msra.mxu0 0.0
    %1170 = vmatprep.subr.mxu0 0.0
    %1171 = vmatpush1.msra.mxu0 0.0
    %1172 = vmatprep.mubr.f32.mxu0 0.0
    %1173 = vmatmul.mubr.f32.gmra.mrb[0].mxu0 %v1102
    %v1174 = vpop.f32.mrb[0].mxu0
    %v1175 = vadd.f32 0.0, %v1174
    %v1176 = vpop.f32.mrb[0].mxu0
    %v1177 = vadd.f32 0.0, %v1176
    %1178 = vdwg.mxu0
    %1179 = vmatprep.subr.mxu0 %v341
    %1180 = vmatpush1.msra.mxu0 %v340
    %1181 = vmatprep.subr.mxu0 %v345
    %1182 = vmatpush1.msra.mxu0 %v344
    %1183 = vmatprep.subr.mxu0 %v349
    %1184 = vmatpush1.msra.mxu0 %v348
    %1185 = vmatprep.subr.mxu0 %v353
    %1186 = vmatpush1.msra.mxu0 %v352
    %1187 = vmatprep.subr.mxu0 %v357
    %1188 = vmatpush1.msra.mxu0 %v356
    %1189 = vmatprep.subr.mxu0 %v361
    %1190 = vmatpush1.msra.mxu0 %v360
    %1191 = vmatprep.subr.mxu0 %v365
    %1192 = vmatpush1.msra.mxu0 %v364
    %1193 = vmatprep.subr.mxu0 %v369
    %1194 = vmatpush1.msra.mxu0 %v368
    %1195 = vmatprep.subr.mxu0 %v373
    %1196 = vmatpush1.msra.mxu0 %v372
    %1197 = vmatprep.subr.mxu0 %v377
    %1198 = vmatpush1.msra.mxu0 %v376
    %1199 = vmatprep.subr.mxu0 %v381
    %1200 = vmatpush1.msra.mxu0 %v380
    %1201 = vmatprep.subr.mxu0 %v385
    %1202 = vmatpush1.msra.mxu0 %v384
    %1203 = vmatprep.subr.mxu0 %v389
    %1204 = vmatpush1.msra.mxu0 %v388
    %1205 = vmatprep.subr.mxu0 %v393
    %1206 = vmatpush1.msra.mxu0 %v392
    %1207 = vmatprep.subr.mxu0 %v397
    %1208 = vmatpush1.msra.mxu0 %v396
    %1209 = vmatprep.subr.mxu0 %v401
    %1210 = vmatpush1.msra.mxu0 %v400
    %1211 = vmatprep.subr.mxu0 0.0
    %1212 = vmatpush1.msra.mxu0 0.0
    %1213 = vmatprep.subr.mxu0 0.0
    %1214 = vmatpush1.msra.mxu0 0.0
    %1215 = vmatprep.subr.mxu0 0.0
    %1216 = vmatpush1.msra.mxu0 0.0
    %1217 = vmatprep.subr.mxu0 0.0
    %1218 = vmatpush1.msra.mxu0 0.0
    %1219 = vmatprep.subr.mxu0 0.0
    %1220 = vmatpush1.msra.mxu0 0.0
    %1221 = vmatprep.subr.mxu0 0.0
    %1222 = vmatpush1.msra.mxu0 0.0
    %1223 = vmatprep.subr.mxu0 0.0
    %1224 = vmatpush1.msra.mxu0 0.0
    %1225 = vmatprep.subr.mxu0 0.0
    %1226 = vmatpush1.msra.mxu0 0.0
    %1227 = vmatprep.subr.mxu0 0.0
    %1228 = vmatpush1.msra.mxu0 0.0
    %1229 = vmatprep.subr.mxu0 0.0
    %1230 = vmatpush1.msra.mxu0 0.0
    %1231 = vmatprep.subr.mxu0 0.0
    %1232 = vmatpush1.msra.mxu0 0.0
    %1233 = vmatprep.subr.mxu0 0.0
    %1234 = vmatpush1.msra.mxu0 0.0
    %1235 = vmatprep.subr.mxu0 0.0
    %1236 = vmatpush1.msra.mxu0 0.0
    %1237 = vmatprep.subr.mxu0 0.0
    %1238 = vmatpush1.msra.mxu0 0.0
    %1239 = vmatprep.subr.mxu0 0.0
    %1240 = vmatpush1.msra.mxu0 0.0
    %1241 = vmatprep.subr.mxu0 0.0
    %1242 = vmatpush1.msra.mxu0 0.0
    %1243 = vmatprep.mubr.f32.mxu0 0.0
    %1244 = vmatmul.mubr.f32.gmra.mrb[0].mxu0 %v1102
    %v1245 = vpop.f32.mrb[0].mxu0
    %v1246 = vadd.f32 0.0, %v1245
    %v1247 = vpop.f32.mrb[0].mxu0
    %v1248 = vadd.f32 0.0, %v1247
    %1249 = vdwg.mxu0
    %v1250 = vadd.f32 %v1104, %v1175
    %v1251 = vadd.f32 %v1105, %v1177
    %v1252 = vadd.f32 %v1106, %v1246
    %v1253 = vadd.f32 %v1107, %v1248
    %v1254 = vxor.u32 %v1250, 2147483648
    %v1255 = vxor.u32 %v1251, 2147483648
    %v1256 = vxor.u32 %v1252, 2147483648
    %v1257 = vmul.f32 %v1254, 1.442695
    %v1258 = vpow.pop %v1257
    %v1259 = vmul.f32 %v1255, 1.442695
    %v1260 = vpow.pop %v1259
    %v1261 = vmul.f32 %v1256, 1.442695
    %v1262 = vpow.pop %v1261
    %v1263 = vadd.f32 %v1258, 1.0
    %v1264 = vadd.f32 %v1260, 1.0
    %v1265 = vadd.f32 %v1262, 1.0
    %v1266 = vrcp.pop %v1263
    %v1267 = vmul.f32 1.0, %v1266
    %v1268 = vrcp.pop %v1264
    %v1269 = vmul.f32 1.0, %v1268
    %v1270 = vrcp.pop %v1265
    %v1271 = vmul.f32 1.0, %v1270
    %v1272 = vtanh.pop %v1253
    %v1273 = vmul.f32 %v1269, %v1100
    %v1274 = vmul.f32 %v1267, %v1272
    %v1275 = vadd.f32 %v1273, %v1274
    %v1276 = vtanh.pop %v1275
    %v1277 = vmul.f32 %v1271, %v1276
    %s1278 = scalar_lea.vmem [#allocation4], 160
    %v1279 = vld [vmem:[%s1278] sm:$0xff]
    %v1280 = vld [vmem:[%s1278 + $0x8] sm:$0xff]
    %v1281 = vld [vmem:[%s1278 + $0x10] sm:$0xff]
    %v1282 = vld [vmem:[%s1278 + $0x18] sm:$0xff]
    %1283 = vmatprep.subr.mxu0 %v339
    %1284 = vmatpush1.msra.mxu0 %v338
    %1285 = vmatprep.subr.mxu0 %v343
    %1286 = vmatpush1.msra.mxu0 %v342
    %1287 = vmatprep.subr.mxu0 %v347
    %1288 = vmatpush1.msra.mxu0 %v346
    %1289 = vmatprep.subr.mxu0 %v351
    %1290 = vmatpush1.msra.mxu0 %v350
    %1291 = vmatprep.subr.mxu0 %v355
    %1292 = vmatpush1.msra.mxu0 %v354
    %1293 = vmatprep.subr.mxu0 %v359
    %1294 = vmatpush1.msra.mxu0 %v358
    %1295 = vmatprep.subr.mxu0 %v363
    %1296 = vmatpush1.msra.mxu0 %v362
    %1297 = vmatprep.subr.mxu0 %v367
    %1298 = vmatpush1.msra.mxu0 %v366
    %1299 = vmatprep.subr.mxu0 %v371
    %1300 = vmatpush1.msra.mxu0 %v370
    %1301 = vmatprep.subr.mxu0 %v375
    %1302 = vmatpush1.msra.mxu0 %v374
    %1303 = vmatprep.subr.mxu0 %v379
    %1304 = vmatpush1.msra.mxu0 %v378
    %1305 = vmatprep.subr.mxu0 %v383
    %1306 = vmatpush1.msra.mxu0 %v382
    %1307 = vmatprep.subr.mxu0 %v387
    %1308 = vmatpush1.msra.mxu0 %v386
    %1309 = vmatprep.subr.mxu0 %v391
    %1310 = vmatpush1.msra.mxu0 %v390
    %1311 = vmatprep.subr.mxu0 %v395
    %1312 = vmatpush1.msra.mxu0 %v394
    %1313 = vmatprep.subr.mxu0 %v399
    %1314 = vmatpush1.msra.mxu0 %v398
    %1315 = vmatprep.subr.mxu0 0.0
    %1316 = vmatpush1.msra.mxu0 0.0
    %1317 = vmatprep.subr.mxu0 0.0
    %1318 = vmatpush1.msra.mxu0 0.0
    %1319 = vmatprep.subr.mxu0 0.0
    %1320 = vmatpush1.msra.mxu0 0.0
    %1321 = vmatprep.subr.mxu0 0.0
    %1322 = vmatpush1.msra.mxu0 0.0
    %1323 = vmatprep.subr.mxu0 0.0
    %1324 = vmatpush1.msra.mxu0 0.0
    %1325 = vmatprep.subr.mxu0 0.0
    %1326 = vmatpush1.msra.mxu0 0.0
    %1327 = vmatprep.subr.mxu0 0.0
    %1328 = vmatpush1.msra.mxu0 0.0
    %1329 = vmatprep.subr.mxu0 0.0
    %1330 = vmatpush1.msra.mxu0 0.0
    %1331 = vmatprep.subr.mxu0 0.0
    %1332 = vmatpush1.msra.mxu0 0.0
    %1333 = vmatprep.subr.mxu0 0.0
    %1334 = vmatpush1.msra.mxu0 0.0
    %1335 = vmatprep.subr.mxu0 0.0
    %1336 = vmatpush1.msra.mxu0 0.0
    %1337 = vmatprep.subr.mxu0 0.0
    %1338 = vmatpush1.msra.mxu0 0.0
    %1339 = vmatprep.subr.mxu0 0.0
    %1340 = vmatpush1.msra.mxu0 0.0
    %1341 = vmatprep.subr.mxu0 0.0
    %1342 = vmatpush1.msra.mxu0 0.0
    %1343 = vmatprep.subr.mxu0 0.0
    %1344 = vmatpush1.msra.mxu0 0.0
    %1345 = vmatprep.subr.mxu0 0.0
    %1346 = vmatpush1.msra.mxu0 0.0
    %1347 = vmatprep.mubr.f32.mxu0 0.0
    %1348 = vmatmul.mubr.f32.gmra.mrb[0].mxu0 %v1277
    %v1349 = vpop.f32.mrb[0].mxu0
    %v1350 = vadd.f32 0.0, %v1349
    %v1351 = vpop.f32.mrb[0].mxu0
    %v1352 = vadd.f32 0.0, %v1351
    %1353 = vdwg.mxu0
    %1354 = vmatprep.subr.mxu0 %v341
    %1355 = vmatpush1.msra.mxu0 %v340
    %1356 = vmatprep.subr.mxu0 %v345
    %1357 = vmatpush1.msra.mxu0 %v344
    %1358 = vmatprep.subr.mxu0 %v349
    %1359 = vmatpush1.msra.mxu0 %v348
    %1360 = vmatprep.subr.mxu0 %v353
    %1361 = vmatpush1.msra.mxu0 %v352
    %1362 = vmatprep.subr.mxu0 %v357
    %1363 = vmatpush1.msra.mxu0 %v356
    %1364 = vmatprep.subr.mxu0 %v361
    %1365 = vmatpush1.msra.mxu0 %v360
    %1366 = vmatprep.subr.mxu0 %v365
    %1367 = vmatpush1.msra.mxu0 %v364
    %1368 = vmatprep.subr.mxu0 %v369
    %1369 = vmatpush1.msra.mxu0 %v368
    %1370 = vmatprep.subr.mxu0 %v373
    %1371 = vmatpush1.msra.mxu0 %v372
    %1372 = vmatprep.subr.mxu0 %v377
    %1373 = vmatpush1.msra.mxu0 %v376
    %1374 = vmatprep.subr.mxu0 %v381
    %1375 = vmatpush1.msra.mxu0 %v380
    %1376 = vmatprep.subr.mxu0 %v385
    %1377 = vmatpush1.msra.mxu0 %v384
    %1378 = vmatprep.subr.mxu0 %v389
    %1379 = vmatpush1.msra.mxu0 %v388
    %1380 = vmatprep.subr.mxu0 %v393
    %1381 = vmatpush1.msra.mxu0 %v392
    %1382 = vmatprep.subr.mxu0 %v397
    %1383 = vmatpush1.msra.mxu0 %v396
    %1384 = vmatprep.subr.mxu0 %v401
    %1385 = vmatpush1.msra.mxu0 %v400
    %1386 = vmatprep.subr.mxu0 0.0
    %1387 = vmatpush1.msra.mxu0 0.0
    %1388 = vmatprep.subr.mxu0 0.0
    %1389 = vmatpush1.msra.mxu0 0.0
    %1390 = vmatprep.subr.mxu0 0.0
    %1391 = vmatpush1.msra.mxu0 0.0
    %1392 = vmatprep.subr.mxu0 0.0
    %1393 = vmatpush1.msra.mxu0 0.0
    %1394 = vmatprep.subr.mxu0 0.0
    %1395 = vmatpush1.msra.mxu0 0.0
    %1396 = vmatprep.subr.mxu0 0.0
    %1397 = vmatpush1.msra.mxu0 0.0
    %1398 = vmatprep.subr.mxu0 0.0
    %1399 = vmatpush1.msra.mxu0 0.0
    %1400 = vmatprep.subr.mxu0 0.0
    %1401 = vmatpush1.msra.mxu0 0.0
    %1402 = vmatprep.subr.mxu0 0.0
    %1403 = vmatpush1.msra.mxu0 0.0
    %1404 = vmatprep.subr.mxu0 0.0
    %1405 = vmatpush1.msra.mxu0 0.0
    %1406 = vmatprep.subr.mxu0 0.0
    %1407 = vmatpush1.msra.mxu0 0.0
    %1408 = vmatprep.subr.mxu0 0.0
    %1409 = vmatpush1.msra.mxu0 0.0
    %1410 = vmatprep.subr.mxu0 0.0
    %1411 = vmatpush1.msra.mxu0 0.0
    %1412 = vmatprep.subr.mxu0 0.0
    %1413 = vmatpush1.msra.mxu0 0.0
    %1414 = vmatprep.subr.mxu0 0.0
    %1415 = vmatpush1.msra.mxu0 0.0
    %1416 = vmatprep.subr.mxu0 0.0
    %1417 = vmatpush1.msra.mxu0 0.0
    %1418 = vmatprep.mubr.f32.mxu0 0.0
    %1419 = vmatmul.mubr.f32.gmra.mrb[0].mxu0 %v1277
    %v1420 = vpop.f32.mrb[0].mxu0
    %v1421 = vadd.f32 0.0, %v1420
    %v1422 = vpop.f32.mrb[0].mxu0
    %v1423 = vadd.f32 0.0, %v1422
    %1424 = vdwg.mxu0
    %v1425 = vadd.f32 %v1279, %v1350
    %v1426 = vadd.f32 %v1280, %v1352
    %v1427 = vadd.f32 %v1281, %v1421
    %v1428 = vadd.f32 %v1282, %v1423
    %v1429 = vxor.u32 %v1425, 2147483648
    %v1430 = vxor.u32 %v1426, 2147483648
    %v1431 = vxor.u32 %v1427, 2147483648
    %v1432 = vmul.f32 %v1429, 1.442695
    %v1433 = vpow.pop %v1432
    %v1434 = vmul.f32 %v1430, 1.442695
    %v1435 = vpow.pop %v1434
    %v1436 = vmul.f32 %v1431, 1.442695
    %v1437 = vpow.pop %v1436
    %v1438 = vadd.f32 %v1433, 1.0
    %v1439 = vadd.f32 %v1435, 1.0
    %v1440 = vadd.f32 %v1437, 1.0
    %v1441 = vrcp.pop %v1438
    %v1442 = vmul.f32 1.0, %v1441
    %v1443 = vrcp.pop %v1439
    %v1444 = vmul.f32 1.0, %v1443
    %v1445 = vrcp.pop %v1440
    %v1446 = vmul.f32 1.0, %v1445
    %v1447 = vtanh.pop %v1428
    %v1448 = vmul.f32 %v1444, %v1275
    %v1449 = vmul.f32 %v1442, %v1447
    %v1450 = vadd.f32 %v1448, %v1449
    %v1451 = vtanh.pop %v1450
    %v1452 = vmul.f32 %v1446, %v1451
    %s1453 = scalar_lea.vmem [#allocation4], 192
    %v1454 = vld [vmem:[%s1453] sm:$0xff]
    %v1455 = vld [vmem:[%s1453 + $0x8] sm:$0xff]
    %v1456 = vld [vmem:[%s1453 + $0x10] sm:$0xff]
    %v1457 = vld [vmem:[%s1453 + $0x18] sm:$0xff]
    %1458 = vmatprep.subr.mxu0 %v339
    %1459 = vmatpush1.msra.mxu0 %v338
    %1460 = vmatprep.subr.mxu0 %v343
    %1461 = vmatpush1.msra.mxu0 %v342
    %1462 = vmatprep.subr.mxu0 %v347
    %1463 = vmatpush1.msra.mxu0 %v346
    %1464 = vmatprep.subr.mxu0 %v351
    %1465 = vmatpush1.msra.mxu0 %v350
    %1466 = vmatprep.subr.mxu0 %v355
    %1467 = vmatpush1.msra.mxu0 %v354
    %1468 = vmatprep.subr.mxu0 %v359
    %1469 = vmatpush1.msra.mxu0 %v358
    %1470 = vmatprep.subr.mxu0 %v363
    %1471 = vmatpush1.msra.mxu0 %v362
    %1472 = vmatprep.subr.mxu0 %v367
    %1473 = vmatpush1.msra.mxu0 %v366
    %1474 = vmatprep.subr.mxu0 %v371
    %1475 = vmatpush1.msra.mxu0 %v370
    %1476 = vmatprep.subr.mxu0 %v375
    %1477 = vmatpush1.msra.mxu0 %v374
    %1478 = vmatprep.subr.mxu0 %v379
    %1479 = vmatpush1.msra.mxu0 %v378
    %1480 = vmatprep.subr.mxu0 %v383
    %1481 = vmatpush1.msra.mxu0 %v382
    %1482 = vmatprep.subr.mxu0 %v387
    %1483 = vmatpush1.msra.mxu0 %v386
    %1484 = vmatprep.subr.mxu0 %v391
    %1485 = vmatpush1.msra.mxu0 %v390
    %1486 = vmatprep.subr.mxu0 %v395
    %1487 = vmatpush1.msra.mxu0 %v394
    %1488 = vmatprep.subr.mxu0 %v399
    %1489 = vmatpush1.msra.mxu0 %v398
    %1490 = vmatprep.subr.mxu0 0.0
    %1491 = vmatpush1.msra.mxu0 0.0
    %1492 = vmatprep.subr.mxu0 0.0
    %1493 = vmatpush1.msra.mxu0 0.0
    %1494 = vmatprep.subr.mxu0 0.0
    %1495 = vmatpush1.msra.mxu0 0.0
    %1496 = vmatprep.subr.mxu0 0.0
    %1497 = vmatpush1.msra.mxu0 0.0
    %1498 = vmatprep.subr.mxu0 0.0
    %1499 = vmatpush1.msra.mxu0 0.0
    %1500 = vmatprep.subr.mxu0 0.0
    %1501 = vmatpush1.msra.mxu0 0.0
    %1502 = vmatprep.subr.mxu0 0.0
    %1503 = vmatpush1.msra.mxu0 0.0
    %1504 = vmatprep.subr.mxu0 0.0
    %1505 = vmatpush1.msra.mxu0 0.0
    %1506 = vmatprep.subr.mxu0 0.0
    %1507 = vmatpush1.msra.mxu0 0.0
    %1508 = vmatprep.subr.mxu0 0.0
    %1509 = vmatpush1.msra.mxu0 0.0
    %1510 = vmatprep.subr.mxu0 0.0
    %1511 = vmatpush1.msra.mxu0 0.0
    %1512 = vmatprep.subr.mxu0 0.0
    %1513 = vmatpush1.msra.mxu0 0.0
    %1514 = vmatprep.subr.mxu0 0.0
    %1515 = vmatpush1.msra.mxu0 0.0
    %1516 = vmatprep.subr.mxu0 0.0
    %1517 = vmatpush1.msra.mxu0 0.0
    %1518 = vmatprep.subr.mxu0 0.0
    %1519 = vmatpush1.msra.mxu0 0.0
    %1520 = vmatprep.subr.mxu0 0.0
    %1521 = vmatpush1.msra.mxu0 0.0
    %1522 = vmatprep.mubr.f32.mxu0 0.0
    %1523 = vmatmul.mubr.f32.gmra.mrb[0].mxu0 %v1452
    %v1524 = vpop.f32.mrb[0].mxu0
    %v1525 = vadd.f32 0.0, %v1524
    %v1526 = vpop.f32.mrb[0].mxu0
    %v1527 = vadd.f32 0.0, %v1526
    %1528 = vdwg.mxu0
    %1529 = vmatprep.subr.mxu0 %v341
    %1530 = vmatpush1.msra.mxu0 %v340
    %1531 = vmatprep.subr.mxu0 %v345
    %1532 = vmatpush1.msra.mxu0 %v344
    %1533 = vmatprep.subr.mxu0 %v349
    %1534 = vmatpush1.msra.mxu0 %v348
    %1535 = vmatprep.subr.mxu0 %v353
    %1536 = vmatpush1.msra.mxu0 %v352
    %1537 = vmatprep.subr.mxu0 %v357
    %1538 = vmatpush1.msra.mxu0 %v356
    %1539 = vmatprep.subr.mxu0 %v361
    %1540 = vmatpush1.msra.mxu0 %v360
    %1541 = vmatprep.subr.mxu0 %v365
    %1542 = vmatpush1.msra.mxu0 %v364
    %1543 = vmatprep.subr.mxu0 %v369
    %1544 = vmatpush1.msra.mxu0 %v368
    %1545 = vmatprep.subr.mxu0 %v373
    %1546 = vmatpush1.msra.mxu0 %v372
    %1547 = vmatprep.subr.mxu0 %v377
    %1548 = vmatpush1.msra.mxu0 %v376
    %1549 = vmatprep.subr.mxu0 %v381
    %1550 = vmatpush1.msra.mxu0 %v380
    %1551 = vmatprep.subr.mxu0 %v385
    %1552 = vmatpush1.msra.mxu0 %v384
    %1553 = vmatprep.subr.mxu0 %v389
    %1554 = vmatpush1.msra.mxu0 %v388
    %1555 = vmatprep.subr.mxu0 %v393
    %1556 = vmatpush1.msra.mxu0 %v392
    %1557 = vmatprep.subr.mxu0 %v397
    %1558 = vmatpush1.msra.mxu0 %v396
    %1559 = vmatprep.subr.mxu0 %v401
    %1560 = vmatpush1.msra.mxu0 %v400
    %1561 = vmatprep.subr.mxu0 0.0
    %1562 = vmatpush1.msra.mxu0 0.0
    %1563 = vmatprep.subr.mxu0 0.0
    %1564 = vmatpush1.msra.mxu0 0.0
    %1565 = vmatprep.subr.mxu0 0.0
    %1566 = vmatpush1.msra.mxu0 0.0
    %1567 = vmatprep.subr.mxu0 0.0
    %1568 = vmatpush1.msra.mxu0 0.0
    %1569 = vmatprep.subr.mxu0 0.0
    %1570 = vmatpush1.msra.mxu0 0.0
    %1571 = vmatprep.subr.mxu0 0.0
    %1572 = vmatpush1.msra.mxu0 0.0
    %1573 = vmatprep.subr.mxu0 0.0
    %1574 = vmatpush1.msra.mxu0 0.0
    %1575 = vmatprep.subr.mxu0 0.0
    %1576 = vmatpush1.msra.mxu0 0.0
    %1577 = vmatprep.subr.mxu0 0.0
    %1578 = vmatpush1.msra.mxu0 0.0
    %1579 = vmatprep.subr.mxu0 0.0
    %1580 = vmatpush1.msra.mxu0 0.0
    %1581 = vmatprep.subr.mxu0 0.0
    %1582 = vmatpush1.msra.mxu0 0.0
    %1583 = vmatprep.subr.mxu0 0.0
    %1584 = vmatpush1.msra.mxu0 0.0
    %1585 = vmatprep.subr.mxu0 0.0
    %1586 = vmatpush1.msra.mxu0 0.0
    %1587 = vmatprep.subr.mxu0 0.0
    %1588 = vmatpush1.msra.mxu0 0.0
    %1589 = vmatprep.subr.mxu0 0.0
    %1590 = vmatpush1.msra.mxu0 0.0
    %1591 = vmatprep.subr.mxu0 0.0
    %1592 = vmatpush1.msra.mxu0 0.0
    %1593 = vmatprep.mubr.f32.mxu0 0.0
    %1594 = vmatmul.mubr.f32.gmra.mrb[0].mxu0 %v1452
    %v1595 = vpop.f32.mrb[0].mxu0
    %v1596 = vadd.f32 0.0, %v1595
    %v1597 = vpop.f32.mrb[0].mxu0
    %v1598 = vadd.f32 0.0, %v1597
    %1599 = vdwg.mxu0
    %v1600 = vadd.f32 %v1454, %v1525
    %v1601 = vadd.f32 %v1455, %v1527
    %v1602 = vadd.f32 %v1456, %v1596
    %v1603 = vadd.f32 %v1457, %v1598
    %v1604 = vxor.u32 %v1600, 2147483648
    %v1605 = vxor.u32 %v1601, 2147483648
    %v1606 = vxor.u32 %v1602, 2147483648
    %v1607 = vmul.f32 %v1604, 1.442695
    %v1608 = vpow.pop %v1607
    %v1609 = vmul.f32 %v1605, 1.442695
    %v1610 = vpow.pop %v1609
    %v1611 = vmul.f32 %v1606, 1.442695
    %v1612 = vpow.pop %v1611
    %v1613 = vadd.f32 %v1608, 1.0
    %v1614 = vadd.f32 %v1610, 1.0
    %v1615 = vadd.f32 %v1612, 1.0
    %v1616 = vrcp.pop %v1613
    %v1617 = vmul.f32 1.0, %v1616
    %v1618 = vrcp.pop %v1614
    %v1619 = vmul.f32 1.0, %v1618
    %v1620 = vrcp.pop %v1615
    %v1621 = vmul.f32 1.0, %v1620
    %v1622 = vtanh.pop %v1603
    %v1623 = vmul.f32 %v1619, %v1450
    %v1624 = vmul.f32 %v1617, %v1622
    %v1625 = vadd.f32 %v1623, %v1624
    %v1626 = vtanh.pop %v1625
    %v1627 = vmul.f32 %v1621, %v1626
    %s1628 = scalar_lea.vmem [#allocation4], 224
    %v1629 = vld [vmem:[%s1628] sm:$0xff]
    %v1630 = vld [vmem:[%s1628 + $0x8] sm:$0xff]
    %v1631 = vld [vmem:[%s1628 + $0x10] sm:$0xff]
    %v1632 = vld [vmem:[%s1628 + $0x18] sm:$0xff]
    %1633 = vmatprep.subr.mxu0 %v339
    %1634 = vmatpush1.msra.mxu0 %v338
    %1635 = vmatprep.subr.mxu0 %v343
    %1636 = vmatpush1.msra.mxu0 %v342
    %1637 = vmatprep.subr.mxu0 %v347
    %1638 = vmatpush1.msra.mxu0 %v346
    %1639 = vmatprep.subr.mxu0 %v351
    %1640 = vmatpush1.msra.mxu0 %v350
    %1641 = vmatprep.subr.mxu0 %v355
    %1642 = vmatpush1.msra.mxu0 %v354
    %1643 = vmatprep.subr.mxu0 %v359
    %1644 = vmatpush1.msra.mxu0 %v358
    %1645 = vmatprep.subr.mxu0 %v363
    %1646 = vmatpush1.msra.mxu0 %v362
    %1647 = vmatprep.subr.mxu0 %v367
    %1648 = vmatpush1.msra.mxu0 %v366
    %1649 = vmatprep.subr.mxu0 %v371
    %1650 = vmatpush1.msra.mxu0 %v370
    %1651 = vmatprep.subr.mxu0 %v375
    %1652 = vmatpush1.msra.mxu0 %v374
    %1653 = vmatprep.subr.mxu0 %v379
    %1654 = vmatpush1.msra.mxu0 %v378
    %1655 = vmatprep.subr.mxu0 %v383
    %1656 = vmatpush1.msra.mxu0 %v382
    %1657 = vmatprep.subr.mxu0 %v387
    %1658 = vmatpush1.msra.mxu0 %v386
    %1659 = vmatprep.subr.mxu0 %v391
    %1660 = vmatpush1.msra.mxu0 %v390
    %1661 = vmatprep.subr.mxu0 %v395
    %1662 = vmatpush1.msra.mxu0 %v394
    %1663 = vmatprep.subr.mxu0 %v399
    %1664 = vmatpush1.msra.mxu0 %v398
    %1665 = vmatprep.subr.mxu0 0.0
    %1666 = vmatpush1.msra.mxu0 0.0
    %1667 = vmatprep.subr.mxu0 0.0
    %1668 = vmatpush1.msra.mxu0 0.0
    %1669 = vmatprep.subr.mxu0 0.0
    %1670 = vmatpush1.msra.mxu0 0.0
    %1671 = vmatprep.subr.mxu0 0.0
    %1672 = vmatpush1.msra.mxu0 0.0
    %1673 = vmatprep.subr.mxu0 0.0
    %1674 = vmatpush1.msra.mxu0 0.0
    %1675 = vmatprep.subr.mxu0 0.0
    %1676 = vmatpush1.msra.mxu0 0.0
    %1677 = vmatprep.subr.mxu0 0.0
    %1678 = vmatpush1.msra.mxu0 0.0
    %1679 = vmatprep.subr.mxu0 0.0
    %1680 = vmatpush1.msra.mxu0 0.0
    %1681 = vmatprep.subr.mxu0 0.0
    %1682 = vmatpush1.msra.mxu0 0.0
    %1683 = vmatprep.subr.mxu0 0.0
    %1684 = vmatpush1.msra.mxu0 0.0
    %1685 = vmatprep.subr.mxu0 0.0
    %1686 = vmatpush1.msra.mxu0 0.0
    %1687 = vmatprep.subr.mxu0 0.0
    %1688 = vmatpush1.msra.mxu0 0.0
    %1689 = vmatprep.subr.mxu0 0.0
    %1690 = vmatpush1.msra.mxu0 0.0
    %1691 = vmatprep.subr.mxu0 0.0
    %1692 = vmatpush1.msra.mxu0 0.0
    %1693 = vmatprep.subr.mxu0 0.0
    %1694 = vmatpush1.msra.mxu0 0.0
    %1695 = vmatprep.subr.mxu0 0.0
    %1696 = vmatpush1.msra.mxu0 0.0
    %1697 = vmatprep.mubr.f32.mxu0 0.0
    %1698 = vmatmul.mubr.f32.gmra.mrb[0].mxu0 %v1627
    %v1699 = vpop.f32.mrb[0].mxu0
    %v1700 = vadd.f32 0.0, %v1699
    %v1701 = vpop.f32.mrb[0].mxu0
    %v1702 = vadd.f32 0.0, %v1701
    %1703 = vdwg.mxu0
    %1704 = vmatprep.subr.mxu0 %v341
    %1705 = vmatpush1.msra.mxu0 %v340
    %1706 = vmatprep.subr.mxu0 %v345
    %1707 = vmatpush1.msra.mxu0 %v344
    %1708 = vmatprep.subr.mxu0 %v349
    %1709 = vmatpush1.msra.mxu0 %v348
    %1710 = vmatprep.subr.mxu0 %v353
    %1711 = vmatpush1.msra.mxu0 %v352
    %1712 = vmatprep.subr.mxu0 %v357
    %1713 = vmatpush1.msra.mxu0 %v356
    %1714 = vmatprep.subr.mxu0 %v361
    %1715 = vmatpush1.msra.mxu0 %v360
    %1716 = vmatprep.subr.mxu0 %v365
    %1717 = vmatpush1.msra.mxu0 %v364
    %1718 = vmatprep.subr.mxu0 %v369
    %1719 = vmatpush1.msra.mxu0 %v368
    %1720 = vmatprep.subr.mxu0 %v373
    %1721 = vmatpush1.msra.mxu0 %v372
    %1722 = vmatprep.subr.mxu0 %v377
    %1723 = vmatpush1.msra.mxu0 %v376
    %1724 = vmatprep.subr.mxu0 %v381
    %1725 = vmatpush1.msra.mxu0 %v380
    %1726 = vmatprep.subr.mxu0 %v385
    %1727 = vmatpush1.msra.mxu0 %v384
    %1728 = vmatprep.subr.mxu0 %v389
    %1729 = vmatpush1.msra.mxu0 %v388
    %1730 = vmatprep.subr.mxu0 %v393
    %1731 = vmatpush1.msra.mxu0 %v392
    %1732 = vmatprep.subr.mxu0 %v397
    %1733 = vmatpush1.msra.mxu0 %v396
    %1734 = vmatprep.subr.mxu0 %v401
    %1735 = vmatpush1.msra.mxu0 %v400
    %1736 = vmatprep.subr.mxu0 0.0
    %1737 = vmatpush1.msra.mxu0 0.0
    %1738 = vmatprep.subr.mxu0 0.0
    %1739 = vmatpush1.msra.mxu0 0.0
    %1740 = vmatprep.subr.mxu0 0.0
    %1741 = vmatpush1.msra.mxu0 0.0
    %1742 = vmatprep.subr.mxu0 0.0
    %1743 = vmatpush1.msra.mxu0 0.0
    %1744 = vmatprep.subr.mxu0 0.0
    %1745 = vmatpush1.msra.mxu0 0.0
    %1746 = vmatprep.subr.mxu0 0.0
    %1747 = vmatpush1.msra.mxu0 0.0
    %1748 = vmatprep.subr.mxu0 0.0
    %1749 = vmatpush1.msra.mxu0 0.0
    %1750 = vmatprep.subr.mxu0 0.0
    %1751 = vmatpush1.msra.mxu0 0.0
    %1752 = vmatprep.subr.mxu0 0.0
    %1753 = vmatpush1.msra.mxu0 0.0
    %1754 = vmatprep.subr.mxu0 0.0
    %1755 = vmatpush1.msra.mxu0 0.0
    %1756 = vmatprep.subr.mxu0 0.0
    %1757 = vmatpush1.msra.mxu0 0.0
    %1758 = vmatprep.subr.mxu0 0.0
    %1759 = vmatpush1.msra.mxu0 0.0
    %1760 = vmatprep.subr.mxu0 0.0
    %1761 = vmatpush1.msra.mxu0 0.0
    %1762 = vmatprep.subr.mxu0 0.0
    %1763 = vmatpush1.msra.mxu0 0.0
    %1764 = vmatprep.subr.mxu0 0.0
    %1765 = vmatpush1.msra.mxu0 0.0
    %1766 = vmatprep.subr.mxu0 0.0
    %1767 = vmatpush1.msra.mxu0 0.0
    %1768 = vmatprep.mubr.f32.mxu0 0.0
    %1769 = vmatmul.mubr.f32.gmra.mrb[0].mxu0 %v1627
    %v1770 = vpop.f32.mrb[0].mxu0
    %v1771 = vadd.f32 0.0, %v1770
    %v1772 = vpop.f32.mrb[0].mxu0
    %v1773 = vadd.f32 0.0, %v1772
    %1774 = vdwg.mxu0
    %v1775 = vadd.f32 %v1629, %v1700
    %v1776 = vadd.f32 %v1630, %v1702
    %v1777 = vadd.f32 %v1631, %v1771
    %v1778 = vadd.f32 %v1632, %v1773
    %v1779 = vxor.u32 %v1775, 2147483648
    %v1780 = vxor.u32 %v1776, 2147483648
    %v1781 = vxor.u32 %v1777, 2147483648
    %v1782 = vmul.f32 %v1779, 1.442695
    %v1783 = vpow.pop %v1782
    %v1784 = vmul.f32 %v1780, 1.442695
    %v1785 = vpow.pop %v1784
    %v1786 = vmul.f32 %v1781, 1.442695
    %v1787 = vpow.pop %v1786
    %v1788 = vadd.f32 %v1783, 1.0
    %v1789 = vadd.f32 %v1785, 1.0
    %v1790 = vadd.f32 %v1787, 1.0
    %v1791 = vrcp.pop %v1788
    %v1792 = vmul.f32 1.0, %v1791
    %v1793 = vrcp.pop %v1789
    %v1794 = vmul.f32 1.0, %v1793
    %v1795 = vrcp.pop %v1790
    %v1796 = vmul.f32 1.0, %v1795
    %v1797 = vtanh.pop %v1778
    %v1798 = vmul.f32 %v1794, %v1625
    %v1799 = vmul.f32 %v1792, %v1797
    %v1800 = vadd.f32 %v1798, %v1799
    %v1801 = vtanh.pop %v1800
    %v1802 = vmul.f32 %v1796, %v1801
    %1803 = vst [vmem:[#allocation2] sm:$0xff] %v1802
    %1804 = vst [vmem:[#allocation3] sm:$0xff] %v1800
    // Predicated region
    $region42: #{tpu_custom_call.1} parent=1 // pred_check
      %p1805 = pneg %p67
    $region43: #{tpu_custom_call.1} parent=1 // pred_check_branch
      %1807 = sbr.rel (%p1805) target = $region45
    $region44: #{tpu_custom_call.1} parent=1 // pred_region
      %v1808 = vld [vmem:[%s4] sm:$0x1]
      %v1810 = vlaneseq
      %v1811 = vshrl.u32 %v1810, 7
      %v1812 = vsub.s32 0, %v1811
      %v1813 = vrot.slane %v1808, %v1812
      %v1815 = vmul.f32 %v1802, %v1813
      %1816 = vadd.xlane.f32.xlu0 %v1815
      %v1817 = vpop.xlane.xlu0 %1816
      %v1818 = vld [vmem:[#allocation5] sm:$0x1]
      %v1820 = vlaneseq
      %v1821 = vshrl.u32 %v1820, 7
      %v1822 = vsub.s32 0, %v1821
      %v1823 = vrot.slane %v1818, %v1822
      %v1825 = vadd.f32 %v1817, %v1823
      %v1826 = vxor.u32 %v1825, 2147483648
      %v1827 = vmul.f32 %v1826, 1.442695
      %v1828 = vpow.pop %v1827
      %v1829 = vadd.f32 %v1828, 1.0
      %v1830 = vrcp.pop %v1829
      %v1831 = vmul.f32 1.0, %v1830
      %vm1832 = vcmask 7168
      %1833 = vst.msk [vmem:[%s6] sm:$0xff] %vm1832, %v1831
    $region45: #{tpu_custom_call.1} parent=1 // pred_fallthru
      _
    // Predicated region
    $region46: #{tpu_custom_call.1} parent=1 // pred_check
      _
    $region47: #{tpu_custom_call.1} parent=1 // pred_check_branch
      %1835 = sbr.rel (0) target = $region49
    $region48: #{tpu_custom_call.1} parent=1 // pred_region
      _
    $region49: #{tpu_custom_call.1} parent=1 // pred_fallthru
      _
    // Predicated region
    $region50: #{tpu_custom_call.1} parent=1 // pred_check
      _
    $region51: #{tpu_custom_call.1} parent=1 // pred_check_branch
      %1837 = sbr.rel (0) target = $region53
    $region52: #{tpu_custom_call.1} parent=1 // pred_region
      _
    $region53: #{tpu_custom_call.1} parent=1 // pred_fallthru
      _
    %1838 = vsyncpa [#allocation7], 1
    %1839 = vsyncpa [#allocation9], 1

</llo_original>
